<compile_context>
chip_gen: v6e
topology: v6e:2x2x1
jax: 0.10.0
libtpu: 0.0.40
codegen_flags: <defaults>
</compile_context>

<pallas_src>
import functools

import jax
import jax.numpy as jnp
import numpy as np
from jax.experimental import pallas as pl
from jax.experimental.pallas import tpu as pltpu


# ----------------------------- fused CBAM kernel -----------------------------
def _cbam_kernel(x_ref, w1_ref, w2_ref, t_ref, out_ref, pad_scr, att_scr, *, H, W, K):
    # x_ref:  (1, C, H*W)   w1_ref: (Cr, C)   w2_ref: (C, Cr)
    # t_ref:  (2, K, Wp, W) Toeplitz form of the 7x7 conv weight
    # pad_scr: VMEM (2, Hp, Wp) zero-padded channel mean/max maps
    # att_scr: VMEM (1, H*W)    lane-dense spatial-attention row
    p = K // 2

    xs = x_ref[0]                                    # (C, HW) f32, spatial on lanes
    C = xs.shape[0]

    # ---- ChannelAttention: global avg/max pool + shared MLP (stacked) + sigmoid ----
    avg = jnp.mean(xs, axis=1, keepdims=True)        # (C, 1)
    mx = jnp.max(xs, axis=1, keepdims=True)          # (C, 1)
    lane = jax.lax.broadcasted_iota(jnp.int32, (C, 2), 1)
    pooled = jnp.where(lane == 0, avg, mx)           # (C, 2) = [avg | max], one MXU pass
    h = jnp.maximum(
        jnp.dot(w1_ref[...], pooled, preferred_element_type=jnp.float32), 0.0)   # (Cr, 2)
    o = jnp.dot(w2_ref[...], h, preferred_element_type=jnp.float32)              # (C, 2)
    scale = jax.nn.sigmoid(o[:, 0:1] + o[:, 1:2])    # (C, 1)
    y = xs * scale                                   # (C, HW), lane-dense

    # ---- SpatialAttention inputs: channel-wise mean / max of y, folded + zero-padded ----
    ch_avg = jnp.mean(y, axis=0, keepdims=True)      # (1, HW)
    ch_max = jnp.max(y, axis=0, keepdims=True)       # (1, HW)

    pad_scr[...] = jnp.zeros_like(pad_scr)           # border zeros == conv padding
    for i in range(H):                               # lane-major row -> (sublane, lane) tile
        pad_scr[0, p + i:p + i + 1, p:p + W] = ch_avg[:, i * W:(i + 1) * W]
        pad_scr[1, p + i:p + i + 1, p:p + W] = ch_max[:, i * W:(i + 1) * W]

    # ---- KxK conv (2 -> 1 channel) as 2*K small Toeplitz matmuls on the MXU ----
    tt = t_ref[...]                                  # (2, K, Wp, W)
    acc = jnp.zeros((H, W), jnp.float32)
    for c in range(2):
        for ki in range(K):
            acc = acc + jnp.dot(pad_scr[c, ki:ki + H, :], tt[c, ki],
                                preferred_element_type=jnp.float32)
    att = jax.nn.sigmoid(acc)                        # (H, W)

    # back to a lane-dense (1, HW) row, then one dense apply + lane-dense store
    for i in range(H):
        att_scr[:, i * W:(i + 1) * W] = att[i:i + 1, :]
    out_ref[0] = (y * att_scr[...]).astype(out_ref.dtype)


# ----------------------------- host-side glue -----------------------------
def _toeplitz_from_conv_weight(w_sa, W, K):
    """(1, 2, K, K) conv weight -> (2, K, Wp, W) with T[c, ki, b, j] = w[c, ki, b-j]."""
    Wp = W + K - 1
    b = jnp.arange(Wp)[:, None]
    j = jnp.arange(W)[None, :]
    kj = b - j                                       # (Wp, W)
    valid = (kj >= 0) & (kj < K)
    kj_c = jnp.clip(kj, 0, K - 1)
    w = w_sa[0].astype(jnp.float32)                  # (2, K, K)
    return jnp.where(valid[None, None], w[:, :, kj_c], 0.0)   # (2, K, Wp, W)


def cbam_forward(x, w1, w2, w_sa, kernel_size=7):
    """x: (N, C, H, W) float32.  Mirrors CBAM.forward semantics, including the
    `len(x) == 2` quirk (batch of exactly 2 -> tuple of the two per-sample results)."""
    N, C, H, W = x.shape
    K = kernel_size
    assert K % 2 == 1
    HW = H * W
    Cr = w1.shape[0]
    Wp = W + K - 1
    Hp = H + K - 1

    t_mat = _toeplitz_from_conv_weight(w_sa, W, K)   # weight-only preprocessing (tiny)
    x_flat = x.reshape(N, C, HW)                     # contiguous -> free reshape

    kern = functools.partial(_cbam_kernel, H=H, W=W, K=K)
    out_flat = pl.pallas_call(
        kern,
        out_shape=jax.ShapeDtypeStruct((N, C, HW), x.dtype),
        grid=(N,),
        in_specs=[
            pl.BlockSpec((1, C, HW), lambda n: (n, 0, 0)),
            pl.BlockSpec((Cr, C), lambda n: (0, 0)),
            pl.BlockSpec((C, Cr), lambda n: (0, 0)),
            pl.BlockSpec((2, K, Wp, W), lambda n: (0, 0, 0, 0)),
        ],
        out_specs=pl.BlockSpec((1, C, HW), lambda n: (n, 0, 0)),
        scratch_shapes=[
            pltpu.VMEM((2, Hp, Wp), jnp.float32),    # padded mean/max maps
            pltpu.VMEM((1, HW), jnp.float32),        # lane-dense attention row
        ],
        compiler_params=pltpu.CompilerParams(dimension_semantics=("parallel",)),
    )(x_flat, w1, w2, t_mat)

    out = out_flat.reshape(N, C, H, W)
    if N == 2:  # matches PyTorch `if len(x) == 2:` -> returns a tuple (x1, x2)
        return out[0], out[1]
    return out


# ----------------------------- plain-JAX reference -----------------------------
def cbam_reference(x, w1, w2, w_sa):
    avg = jnp.mean(x, axis=(2, 3))  # (N, C)
    mx = jnp.max(x, axis=(2, 3))

    def mlp(p):
        h = jnp.maximum(p @ w1.T, 0.0)
        return h @ w2.T

    scale = jax.nn.sigmoid(mlp(avg) + mlp(mx))[:, :, None, None]
    y = x * scale
    ch_avg = jnp.mean(y, axis=1, keepdims=True)
    ch_max = jnp.max(y, axis=1, keepdims=True)
    p2 = jnp.concatenate([ch_avg, ch_max], axis=1)  # (N, 2, H, W)
    conv = jax.lax.conv_general_dilated(
        p2, w_sa, window_strides=(1, 1), padding=((3, 3), (3, 3)),
        dimension_numbers=("NCHW", "OIHW", "NCHW"))
    att = jax.nn.sigmoid(conv)
    return y * att


if __name__ == "__main__":
    key = jax.random.PRNGKey(0)
    k1, k2, k3, kx = jax.random.split(key, 4)

    N, C, H, W = 2, 32, 16, 16  # planes=32 so that planes // 16 = 2 (> 0)
    Cr = C // 16

    # deterministic synthetic parameters (shapes from the module __init__)
    w1 = jax.random.normal(k1, (Cr, C), jnp.float32) * 0.2          # Conv2d(C, C//16, 1, bias=False)
    w2 = jax.random.normal(k2, (C, Cr), jnp.float32) * 0.2          # Conv2d(C//16, C, 1, bias=False)
    w_sa = jax.random.normal(k3, (1, 2, 7, 7), jnp.float32) * 0.1   # Conv2d(2, 1, 7, padding=3, bias=False)

    x = jax.random.normal(kx, (N, C, H, W), jnp.float32)

    out = cbam_forward(x, w1, w2, w_sa)
    out = jax.block_until_ready(out)

    # numerical check against a plain-JAX reference
    ref = cbam_reference(x, w1, w2, w_sa)
    got = jnp.stack(out, axis=0) if isinstance(out, tuple) else out
    np.testing.assert_allclose(np.asarray(got), np.asarray(ref), rtol=2e-3, atol=2e-3)

    print("KERNEL_OK")
</pallas_src>

<mosaic_0001>
module attributes {stable_mosaic.version = 11 : i64} {
  func.func @_cbam_kernel(%arg0: i32, %arg1: memref<1x32x256xf32, #tpu.memory_space<vmem>>, %arg2: memref<2x32xf32, #tpu.memory_space<vmem>>, %arg3: memref<32x2xf32, #tpu.memory_space<vmem>>, %arg4: memref<2x7x22x16xf32, #tpu.memory_space<vmem>>, %arg5: memref<1x32x256xf32, #tpu.memory_space<vmem>>, %arg6: memref<2x22x22xf32, #tpu.memory_space<vmem>>, %arg7: memref<1x256xf32, #tpu.memory_space<vmem>>) attributes {dimension_semantics = [#tpu.dimension_semantics<parallel>], iteration_bounds = array<i64: 2>, scalar_prefetch = 0 : i64, scratch_operands = 2 : i64, tpu.core_type = #tpu.core_type<tc>, window_params = [{transform_indices = @transform_0, window_bounds = array<i64: 1, 32, 256>}, {pipeline_mode = #tpu.pipeline_mode<synchronous>, transform_indices = @transform_1, window_bounds = array<i64: 2, 32>}, {pipeline_mode = #tpu.pipeline_mode<synchronous>, transform_indices = @transform_2, window_bounds = array<i64: 32, 2>}, {pipeline_mode = #tpu.pipeline_mode<synchronous>, transform_indices = @transform_3, window_bounds = array<i64: 2, 7, 22, 16>}, {transform_indices = @transform_4, window_bounds = array<i64: 1, 32, 256>}]} {
    %c0 = arith.constant 0 : index
    %c0_0 = arith.constant 0 : index
    %c0_1 = arith.constant 0 : index
    %0 = vector.load %arg1[%c0, %c0_0, %c0_1] : memref<1x32x256xf32, #tpu.memory_space<vmem>>, vector<1x32x256xf32>
    %1 = vector.shape_cast %0 : vector<1x32x256xf32> to vector<32x256xf32>
    %cst = arith.constant dense<0.000000e+00> : vector<32xf32>
    %2 = vector.multi_reduction <add>, %1, %cst [1] : vector<32x256xf32> to vector<32xf32>
    %3 = vector.shape_cast %2 : vector<32xf32> to vector<32x1xf32>
    %cst_2 = arith.constant 2.560000e+02 : f32
    %4 = vector.broadcast %cst_2 : f32 to vector<32x1xf32>
    %5 = arith.divf %3, %4 : vector<32x1xf32>
    %cst_3 = arith.constant dense<0xFF800000> : vector<32xf32>
    %6 = vector.multi_reduction <maximumf>, %1, %cst_3 [1] : vector<32x256xf32> to vector<32xf32>
    %7 = vector.shape_cast %6 : vector<32xf32> to vector<32x1xf32>
    %8 = tpu.iota {dimensions = array<i32: 1>} : vector<32x2xi32>
    %c0_i32 = arith.constant 0 : i32
    %9 = vector.broadcast %c0_i32 : i32 to vector<32x2xi32>
    %10 = arith.cmpi eq, %8, %9 : vector<32x2xi32>
    %11 = vector.shape_cast %5 : vector<32x1xf32> to vector<32x1xf32>
    %12 = vector.broadcast %11 : vector<32x1xf32> to vector<32x2xf32>
    %13 = vector.shape_cast %7 : vector<32x1xf32> to vector<32x1xf32>
    %14 = vector.broadcast %13 : vector<32x1xf32> to vector<32x2xf32>
    %15 = arith.select %10, %12, %14 : vector<32x2xi1>, vector<32x2xf32>
    %c0_4 = arith.constant 0 : index
    %c0_5 = arith.constant 0 : index
    %16 = vector.load %arg2[%c0_4, %c0_5] : memref<2x32xf32, #tpu.memory_space<vmem>>, vector<2x32xf32>
    %cst_6 = arith.constant dense<0.000000e+00> : vector<2x2xf32>
    %17 = tpu.matmul %16, %15, %cst_6 {dimension_numbers = #tpu.dot_dimension_numbers<[1], [0], [0], [1], [0, 0, 1, 1], [], []>} : vector<2x32xf32>, vector<32x2xf32>, vector<2x2xf32> -> vector<2x2xf32>
    %cst_7 = arith.constant 0.000000e+00 : f32
    %18 = vector.broadcast %cst_7 : f32 to vector<2x2xf32>
    %19 = arith.maximumf %17, %18 : vector<2x2xf32>
    %c0_8 = arith.constant 0 : index
    %c0_9 = arith.constant 0 : index
    %20 = vector.load %arg3[%c0_8, %c0_9] : memref<32x2xf32, #tpu.memory_space<vmem>>, vector<32x2xf32>
    %cst_10 = arith.constant dense<0.000000e+00> : vector<32x2xf32>
    %21 = tpu.matmul %20, %19, %cst_10 {dimension_numbers = #tpu.dot_dimension_numbers<[1], [0], [0], [1], [0, 0, 1, 1], [], []>} : vector<32x2xf32>, vector<2x2xf32>, vector<32x2xf32> -> vector<32x2xf32>
    %22 = vector.extract_strided_slice %21 {offsets = [0, 0], sizes = [32, 1], strides = [1, 1]} : vector<32x2xf32> to vector<32x1xf32>
    %23 = vector.extract_strided_slice %21 {offsets = [0, 1], sizes = [32, 1], strides = [1, 1]} : vector<32x2xf32> to vector<32x1xf32>
    %24 = arith.addf %22, %23 : vector<32x1xf32>
    %25 = arith.negf %24 : vector<32x1xf32>
    %26 = math.exp %25 : vector<32x1xf32>
    %cst_11 = arith.constant 1.000000e+00 : f32
    %27 = vector.broadcast %cst_11 : f32 to vector<32x1xf32>
    %28 = arith.addf %27, %26 : vector<32x1xf32>
    %29 = arith.divf %27, %28 : vector<32x1xf32>
    %30 = vector.broadcast %29 : vector<32x1xf32> to vector<32x256xf32>
    %31 = arith.mulf %1, %30 : vector<32x256xf32>
    %cst_12 = arith.constant dense<0.000000e+00> : vector<256xf32>
    %32 = vector.multi_reduction <add>, %31, %cst_12 [0] : vector<32x256xf32> to vector<256xf32>
    %33 = vector.shape_cast %32 : vector<256xf32> to vector<1x256xf32>
    %cst_13 = arith.constant 3.200000e+01 : f32
    %34 = vector.broadcast %cst_13 : f32 to vector<1x256xf32>
    %35 = arith.divf %33, %34 : vector<1x256xf32>
    %cst_14 = arith.constant dense<0xFF800000> : vector<256xf32>
    %36 = vector.multi_reduction <maximumf>, %31, %cst_14 [0] : vector<32x256xf32> to vector<256xf32>
    %37 = vector.shape_cast %36 : vector<256xf32> to vector<1x256xf32>
    %cst_15 = arith.constant 0.000000e+00 : f32
    %38 = vector.broadcast %cst_15 : f32 to vector<2x22x22xf32>
    %c0_16 = arith.constant 0 : index
    %c0_17 = arith.constant 0 : index
    %c0_18 = arith.constant 0 : index
    %39 = vector.load %arg6[%c0_16, %c0_17, %c0_18] : memref<2x22x22xf32, #tpu.memory_space<vmem>>, vector<2x22x22xf32>
    tpu.vector_store %arg6[%c0_16, %c0_17, %c0_18], %38 {strides = array<i32>} : memref<2x22x22xf32, #tpu.memory_space<vmem>>, vector<2x22x22xf32>,
    %40 = vector.extract_strided_slice %35 {offsets = [0, 0], sizes = [1, 16], strides = [1, 1]} : vector<1x256xf32> to vector<1x16xf32>
    %c0_19 = arith.constant 0 : index
    %c3 = arith.constant 3 : index
    %c3_20 = arith.constant 3 : index
    %41 = vector.load %arg6[%c0_19, %c3, %c3_20] : memref<2x22x22xf32, #tpu.memory_space<vmem>>, vector<1x1x16xf32>
    %42 = vector.shape_cast %41 : vector<1x1x16xf32> to vector<1x16xf32>
    %43 = vector.shape_cast %40 : vector<1x16xf32> to vector<1x1x16xf32>
    tpu.vector_store %arg6[%c0_19, %c3, %c3_20], %43 {strides = array<i32>} : memref<2x22x22xf32, #tpu.memory_space<vmem>>, vector<1x1x16xf32>,
    %44 = vector.extract_strided_slice %37 {offsets = [0, 0], sizes = [1, 16], strides = [1, 1]} : vector<1x256xf32> to vector<1x16xf32>
    %c1 = arith.constant 1 : index
    %c3_21 = arith.constant 3 : index
    %c3_22 = arith.constant 3 : index
    %45 = vector.load %arg6[%c1, %c3_21, %c3_22] : memref<2x22x22xf32, #tpu.memory_space<vmem>>, vector<1x1x16xf32>
    %46 = vector.shape_cast %45 : vector<1x1x16xf32> to vector<1x16xf32>
    %47 = vector.shape_cast %44 : vector<1x16xf32> to vector<1x1x16xf32>
    tpu.vector_store %arg6[%c1, %c3_21, %c3_22], %47 {strides = array<i32>} : memref<2x22x22xf32, #tpu.memory_space<vmem>>, vector<1x1x16xf32>,
    %48 = vector.extract_strided_slice %35 {offsets = [0, 16], sizes = [1, 16], strides = [1, 1]} : vector<1x256xf32> to vector<1x16xf32>
    %c0_23 = arith.constant 0 : index
    %c4 = arith.constant 4 : index
    %c3_24 = arith.constant 3 : index
    %49 = vector.load %arg6[%c0_23, %c4, %c3_24] : memref<2x22x22xf32, #tpu.memory_space<vmem>>, vector<1x1x16xf32>
    %50 = vector.shape_cast %49 : vector<1x1x16xf32> to vector<1x16xf32>
    %51 = vector.shape_cast %48 : vector<1x16xf32> to vector<1x1x16xf32>
    tpu.vector_store %arg6[%c0_23, %c4, %c3_24], %51 {strides = array<i32>} : memref<2x22x22xf32, #tpu.memory_space<vmem>>, vector<1x1x16xf32>,
    %52 = vector.extract_strided_slice %37 {offsets = [0, 16], sizes = [1, 16], strides = [1, 1]} : vector<1x256xf32> to vector<1x16xf32>
    %c1_25 = arith.constant 1 : index
    %c4_26 = arith.constant 4 : index
    %c3_27 = arith.constant 3 : index
    %53 = vector.load %arg6[%c1_25, %c4_26, %c3_27] : memref<2x22x22xf32, #tpu.memory_space<vmem>>, vector<1x1x16xf32>
    %54 = vector.shape_cast %53 : vector<1x1x16xf32> to vector<1x16xf32>
    %55 = vector.shape_cast %52 : vector<1x16xf32> to vector<1x1x16xf32>
    tpu.vector_store %arg6[%c1_25, %c4_26, %c3_27], %55 {strides = array<i32>} : memref<2x22x22xf32, #tpu.memory_space<vmem>>, vector<1x1x16xf32>,
    %56 = vector.extract_strided_slice %35 {offsets = [0, 32], sizes = [1, 16], strides = [1, 1]} : vector<1x256xf32> to vector<1x16xf32>
    %c0_28 = arith.constant 0 : index
    %c5 = arith.constant 5 : index
    %c3_29 = arith.constant 3 : index
    %57 = vector.load %arg6[%c0_28, %c5, %c3_29] : memref<2x22x22xf32, #tpu.memory_space<vmem>>, vector<1x1x16xf32>
    %58 = vector.shape_cast %57 : vector<1x1x16xf32> to vector<1x16xf32>
    %59 = vector.shape_cast %56 : vector<1x16xf32> to vector<1x1x16xf32>
    tpu.vector_store %arg6[%c0_28, %c5, %c3_29], %59 {strides = array<i32>} : memref<2x22x22xf32, #tpu.memory_space<vmem>>, vector<1x1x16xf32>,
    %60 = vector.extract_strided_slice %37 {offsets = [0, 32], sizes = [1, 16], strides = [1, 1]} : vector<1x256xf32> to vector<1x16xf32>
    %c1_30 = arith.constant 1 : index
    %c5_31 = arith.constant 5 : index
    %c3_32 = arith.constant 3 : index
    %61 = vector.load %arg6[%c1_30, %c5_31, %c3_32] : memref<2x22x22xf32, #tpu.memory_space<vmem>>, vector<1x1x16xf32>
    %62 = vector.shape_cast %61 : vector<1x1x16xf32> to vector<1x16xf32>
    %63 = vector.shape_cast %60 : vector<1x16xf32> to vector<1x1x16xf32>
    tpu.vector_store %arg6[%c1_30, %c5_31, %c3_32], %63 {strides = array<i32>} : memref<2x22x22xf32, #tpu.memory_space<vmem>>, vector<1x1x16xf32>,
    %64 = vector.extract_strided_slice %35 {offsets = [0, 48], sizes = [1, 16], strides = [1, 1]} : vector<1x256xf32> to vector<1x16xf32>
    %c0_33 = arith.constant 0 : index
    %c6 = arith.constant 6 : index
    %c3_34 = arith.constant 3 : index
    %65 = vector.load %arg6[%c0_33, %c6, %c3_34] : memref<2x22x22xf32, #tpu.memory_space<vmem>>, vector<1x1x16xf32>
    %66 = vector.shape_cast %65 : vector<1x1x16xf32> to vector<1x16xf32>
    %67 = vector.shape_cast %64 : vector<1x16xf32> to vector<1x1x16xf32>
    tpu.vector_store %arg6[%c0_33, %c6, %c3_34], %67 {strides = array<i32>} : memref<2x22x22xf32, #tpu.memory_space<vmem>>, vector<1x1x16xf32>,
    %68 = vector.extract_strided_slice %37 {offsets = [0, 48], sizes = [1, 16], strides = [1, 1]} : vector<1x256xf32> to vector<1x16xf32>
    %c1_35 = arith.constant 1 : index
    %c6_36 = arith.constant 6 : index
    %c3_37 = arith.constant 3 : index
    %69 = vector.load %arg6[%c1_35, %c6_36, %c3_37] : memref<2x22x22xf32, #tpu.memory_space<vmem>>, vector<1x1x16xf32>
    %70 = vector.shape_cast %69 : vector<1x1x16xf32> to vector<1x16xf32>
    %71 = vector.shape_cast %68 : vector<1x16xf32> to vector<1x1x16xf32>
    tpu.vector_store %arg6[%c1_35, %c6_36, %c3_37], %71 {strides = array<i32>} : memref<2x22x22xf32, #tpu.memory_space<vmem>>, vector<1x1x16xf32>,
    %72 = vector.extract_strided_slice %35 {offsets = [0, 64], sizes = [1, 16], strides = [1, 1]} : vector<1x256xf32> to vector<1x16xf32>
    %c0_38 = arith.constant 0 : index
    %c7 = arith.constant 7 : index
    %c3_39 = arith.constant 3 : index
    %73 = vector.load %arg6[%c0_38, %c7, %c3_39] : memref<2x22x22xf32, #tpu.memory_space<vmem>>, vector<1x1x16xf32>
    %74 = vector.shape_cast %73 : vector<1x1x16xf32> to vector<1x16xf32>
    %75 = vector.shape_cast %72 : vector<1x16xf32> to vector<1x1x16xf32>
    tpu.vector_store %arg6[%c0_38, %c7, %c3_39], %75 {strides = array<i32>} : memref<2x22x22xf32, #tpu.memory_space<vmem>>, vector<1x1x16xf32>,
    %76 = vector.extract_strided_slice %37 {offsets = [0, 64], sizes = [1, 16], strides = [1, 1]} : vector<1x256xf32> to vector<1x16xf32>
    %c1_40 = arith.constant 1 : index
    %c7_41 = arith.constant 7 : index
    %c3_42 = arith.constant 3 : index
    %77 = vector.load %arg6[%c1_40, %c7_41, %c3_42] : memref<2x22x22xf32, #tpu.memory_space<vmem>>, vector<1x1x16xf32>
    %78 = vector.shape_cast %77 : vector<1x1x16xf32> to vector<1x16xf32>
    %79 = vector.shape_cast %76 : vector<1x16xf32> to vector<1x1x16xf32>
    tpu.vector_store %arg6[%c1_40, %c7_41, %c3_42], %79 {strides = array<i32>} : memref<2x22x22xf32, #tpu.memory_space<vmem>>, vector<1x1x16xf32>,
    %80 = vector.extract_strided_slice %35 {offsets = [0, 80], sizes = [1, 16], strides = [1, 1]} : vector<1x256xf32> to vector<1x16xf32>
    %c0_43 = arith.constant 0 : index
    %c8 = arith.constant 8 : index
    %c3_44 = arith.constant 3 : index
    %81 = vector.load %arg6[%c0_43, %c8, %c3_44] : memref<2x22x22xf32, #tpu.memory_space<vmem>>, vector<1x1x16xf32>
    %82 = vector.shape_cast %81 : vector<1x1x16xf32> to vector<1x16xf32>
    %83 = vector.shape_cast %80 : vector<1x16xf32> to vector<1x1x16xf32>
    tpu.vector_store %arg6[%c0_43, %c8, %c3_44], %83 {strides = array<i32>} : memref<2x22x22xf32, #tpu.memory_space<vmem>>, vector<1x1x16xf32>,
    %84 = vector.extract_strided_slice %37 {offsets = [0, 80], sizes = [1, 16], strides = [1, 1]} : vector<1x256xf32> to vector<1x16xf32>
    %c1_45 = arith.constant 1 : index
    %c8_46 = arith.constant 8 : index
    %c3_47 = arith.constant 3 : index
    %85 = vector.load %arg6[%c1_45, %c8_46, %c3_47] : memref<2x22x22xf32, #tpu.memory_space<vmem>>, vector<1x1x16xf32>
    %86 = vector.shape_cast %85 : vector<1x1x16xf32> to vector<1x16xf32>
    %87 = vector.shape_cast %84 : vector<1x16xf32> to vector<1x1x16xf32>
    tpu.vector_store %arg6[%c1_45, %c8_46, %c3_47], %87 {strides = array<i32>} : memref<2x22x22xf32, #tpu.memory_space<vmem>>, vector<1x1x16xf32>,
    %88 = vector.extract_strided_slice %35 {offsets = [0, 96], sizes = [1, 16], strides = [1, 1]} : vector<1x256xf32> to vector<1x16xf32>
    %c0_48 = arith.constant 0 : index
    %c9 = arith.constant 9 : index
    %c3_49 = arith.constant 3 : index
    %89 = vector.load %arg6[%c0_48, %c9, %c3_49] : memref<2x22x22xf32, #tpu.memory_space<vmem>>, vector<1x1x16xf32>
    %90 = vector.shape_cast %89 : vector<1x1x16xf32> to vector<1x16xf32>
    %91 = vector.shape_cast %88 : vector<1x16xf32> to vector<1x1x16xf32>
    tpu.vector_store %arg6[%c0_48, %c9, %c3_49], %91 {strides = array<i32>} : memref<2x22x22xf32, #tpu.memory_space<vmem>>, vector<1x1x16xf32>,
    %92 = vector.extract_strided_slice %37 {offsets = [0, 96], sizes = [1, 16], strides = [1, 1]} : vector<1x256xf32> to vector<1x16xf32>
    %c1_50 = arith.constant 1 : index
    %c9_51 = arith.constant 9 : index
    %c3_52 = arith.constant 3 : index
    %93 = vector.load %arg6[%c1_50, %c9_51, %c3_52] : memref<2x22x22xf32, #tpu.memory_space<vmem>>, vector<1x1x16xf32>
    %94 = vector.shape_cast %93 : vector<1x1x16xf32> to vector<1x16xf32>
    %95 = vector.shape_cast %92 : vector<1x16xf32> to vector<1x1x16xf32>
    tpu.vector_store %arg6[%c1_50, %c9_51, %c3_52], %95 {strides = array<i32>} : memref<2x22x22xf32, #tpu.memory_space<vmem>>, vector<1x1x16xf32>,
    %96 = vector.extract_strided_slice %35 {offsets = [0, 112], sizes = [1, 16], strides = [1, 1]} : vector<1x256xf32> to vector<1x16xf32>
    %c0_53 = arith.constant 0 : index
    %c10 = arith.constant 10 : index
    %c3_54 = arith.constant 3 : index
    %97 = vector.load %arg6[%c0_53, %c10, %c3_54] : memref<2x22x22xf32, #tpu.memory_space<vmem>>, vector<1x1x16xf32>
    %98 = vector.shape_cast %97 : vector<1x1x16xf32> to vector<1x16xf32>
    %99 = vector.shape_cast %96 : vector<1x16xf32> to vector<1x1x16xf32>
    tpu.vector_store %arg6[%c0_53, %c10, %c3_54], %99 {strides = array<i32>} : memref<2x22x22xf32, #tpu.memory_space<vmem>>, vector<1x1x16xf32>,
    %100 = vector.extract_strided_slice %37 {offsets = [0, 112], sizes = [1, 16], strides = [1, 1]} : vector<1x256xf32> to vector<1x16xf32>
    %c1_55 = arith.constant 1 : index
    %c10_56 = arith.constant 10 : index
    %c3_57 = arith.constant 3 : index
    %101 = vector.load %arg6[%c1_55, %c10_56, %c3_57] : memref<2x22x22xf32, #tpu.memory_space<vmem>>, vector<1x1x16xf32>
    %102 = vector.shape_cast %101 : vector<1x1x16xf32> to vector<1x16xf32>
    %103 = vector.shape_cast %100 : vector<1x16xf32> to vector<1x1x16xf32>
    tpu.vector_store %arg6[%c1_55, %c10_56, %c3_57], %103 {strides = array<i32>} : memref<2x22x22xf32, #tpu.memory_space<vmem>>, vector<1x1x16xf32>,
    %104 = vector.extract_strided_slice %35 {offsets = [0, 128], sizes = [1, 16], strides = [1, 1]} : vector<1x256xf32> to vector<1x16xf32>
    %c0_58 = arith.constant 0 : index
    %c11 = arith.constant 11 : index
    %c3_59 = arith.constant 3 : index
    %105 = vector.load %arg6[%c0_58, %c11, %c3_59] : memref<2x22x22xf32, #tpu.memory_space<vmem>>, vector<1x1x16xf32>
    %106 = vector.shape_cast %105 : vector<1x1x16xf32> to vector<1x16xf32>
    %107 = vector.shape_cast %104 : vector<1x16xf32> to vector<1x1x16xf32>
    tpu.vector_store %arg6[%c0_58, %c11, %c3_59], %107 {strides = array<i32>} : memref<2x22x22xf32, #tpu.memory_space<vmem>>, vector<1x1x16xf32>,
    %108 = vector.extract_strided_slice %37 {offsets = [0, 128], sizes = [1, 16], strides = [1, 1]} : vector<1x256xf32> to vector<1x16xf32>
    %c1_60 = arith.constant 1 : index
    %c11_61 = arith.constant 11 : index
    %c3_62 = arith.constant 3 : index
    %109 = vector.load %arg6[%c1_60, %c11_61, %c3_62] : memref<2x22x22xf32, #tpu.memory_space<vmem>>, vector<1x1x16xf32>
    %110 = vector.shape_cast %109 : vector<1x1x16xf32> to vector<1x16xf32>
    %111 = vector.shape_cast %108 : vector<1x16xf32> to vector<1x1x16xf32>
    tpu.vector_store %arg6[%c1_60, %c11_61, %c3_62], %111 {strides = array<i32>} : memref<2x22x22xf32, #tpu.memory_space<vmem>>, vector<1x1x16xf32>,
    %112 = vector.extract_strided_slice %35 {offsets = [0, 144], sizes = [1, 16], strides = [1, 1]} : vector<1x256xf32> to vector<1x16xf32>
    %c0_63 = arith.constant 0 : index
    %c12 = arith.constant 12 : index
    %c3_64 = arith.constant 3 : index
    %113 = vector.load %arg6[%c0_63, %c12, %c3_64] : memref<2x22x22xf32, #tpu.memory_space<vmem>>, vector<1x1x16xf32>
    %114 = vector.shape_cast %113 : vector<1x1x16xf32> to vector<1x16xf32>
    %115 = vector.shape_cast %112 : vector<1x16xf32> to vector<1x1x16xf32>
    tpu.vector_store %arg6[%c0_63, %c12, %c3_64], %115 {strides = array<i32>} : memref<2x22x22xf32, #tpu.memory_space<vmem>>, vector<1x1x16xf32>,
    %116 = vector.extract_strided_slice %37 {offsets = [0, 144], sizes = [1, 16], strides = [1, 1]} : vector<1x256xf32> to vector<1x16xf32>
    %c1_65 = arith.constant 1 : index
    %c12_66 = arith.constant 12 : index
    %c3_67 = arith.constant 3 : index
    %117 = vector.load %arg6[%c1_65, %c12_66, %c3_67] : memref<2x22x22xf32, #tpu.memory_space<vmem>>, vector<1x1x16xf32>
    %118 = vector.shape_cast %117 : vector<1x1x16xf32> to vector<1x16xf32>
    %119 = vector.shape_cast %116 : vector<1x16xf32> to vector<1x1x16xf32>
    tpu.vector_store %arg6[%c1_65, %c12_66, %c3_67], %119 {strides = array<i32>} : memref<2x22x22xf32, #tpu.memory_space<vmem>>, vector<1x1x16xf32>,
    %120 = vector.extract_strided_slice %35 {offsets = [0, 160], sizes = [1, 16], strides = [1, 1]} : vector<1x256xf32> to vector<1x16xf32>
    %c0_68 = arith.constant 0 : index
    %c13 = arith.constant 13 : index
    %c3_69 = arith.constant 3 : index
    %121 = vector.load %arg6[%c0_68, %c13, %c3_69] : memref<2x22x22xf32, #tpu.memory_space<vmem>>, vector<1x1x16xf32>
    %122 = vector.shape_cast %121 : vector<1x1x16xf32> to vector<1x16xf32>
    %123 = vector.shape_cast %120 : vector<1x16xf32> to vector<1x1x16xf32>
    tpu.vector_store %arg6[%c0_68, %c13, %c3_69], %123 {strides = array<i32>} : memref<2x22x22xf32, #tpu.memory_space<vmem>>, vector<1x1x16xf32>,
    %124 = vector.extract_strided_slice %37 {offsets = [0, 160], sizes = [1, 16], strides = [1, 1]} : vector<1x256xf32> to vector<1x16xf32>
    %c1_70 = arith.constant 1 : index
    %c13_71 = arith.constant 13 : index
    %c3_72 = arith.constant 3 : index
    %125 = vector.load %arg6[%c1_70, %c13_71, %c3_72] : memref<2x22x22xf32, #tpu.memory_space<vmem>>, vector<1x1x16xf32>
    %126 = vector.shape_cast %125 : vector<1x1x16xf32> to vector<1x16xf32>
    %127 = vector.shape_cast %124 : vector<1x16xf32> to vector<1x1x16xf32>
    tpu.vector_store %arg6[%c1_70, %c13_71, %c3_72], %127 {strides = array<i32>} : memref<2x22x22xf32, #tpu.memory_space<vmem>>, vector<1x1x16xf32>,
    %128 = vector.extract_strided_slice %35 {offsets = [0, 176], sizes = [1, 16], strides = [1, 1]} : vector<1x256xf32> to vector<1x16xf32>
    %c0_73 = arith.constant 0 : index
    %c14 = arith.constant 14 : index
    %c3_74 = arith.constant 3 : index
    %129 = vector.load %arg6[%c0_73, %c14, %c3_74] : memref<2x22x22xf32, #tpu.memory_space<vmem>>, vector<1x1x16xf32>
    %130 = vector.shape_cast %129 : vector<1x1x16xf32> to vector<1x16xf32>
    %131 = vector.shape_cast %128 : vector<1x16xf32> to vector<1x1x16xf32>
    tpu.vector_store %arg6[%c0_73, %c14, %c3_74], %131 {strides = array<i32>} : memref<2x22x22xf32, #tpu.memory_space<vmem>>, vector<1x1x16xf32>,
    %132 = vector.extract_strided_slice %37 {offsets = [0, 176], sizes = [1, 16], strides = [1, 1]} : vector<1x256xf32> to vector<1x16xf32>
    %c1_75 = arith.constant 1 : index
    %c14_76 = arith.constant 14 : index
    %c3_77 = arith.constant 3 : index
    %133 = vector.load %arg6[%c1_75, %c14_76, %c3_77] : memref<2x22x22xf32, #tpu.memory_space<vmem>>, vector<1x1x16xf32>
    %134 = vector.shape_cast %133 : vector<1x1x16xf32> to vector<1x16xf32>
    %135 = vector.shape_cast %132 : vector<1x16xf32> to vector<1x1x16xf32>
    tpu.vector_store %arg6[%c1_75, %c14_76, %c3_77], %135 {strides = array<i32>} : memref<2x22x22xf32, #tpu.memory_space<vmem>>, vector<1x1x16xf32>,
    %136 = vector.extract_strided_slice %35 {offsets = [0, 192], sizes = [1, 16], strides = [1, 1]} : vector<1x256xf32> to vector<1x16xf32>
    %c0_78 = arith.constant 0 : index
    %c15 = arith.constant 15 : index
    %c3_79 = arith.constant 3 : index
    %137 = vector.load %arg6[%c0_78, %c15, %c3_79] : memref<2x22x22xf32, #tpu.memory_space<vmem>>, vector<1x1x16xf32>
    %138 = vector.shape_cast %137 : vector<1x1x16xf32> to vector<1x16xf32>
    %139 = vector.shape_cast %136 : vector<1x16xf32> to vector<1x1x16xf32>
    tpu.vector_store %arg6[%c0_78, %c15, %c3_79], %139 {strides = array<i32>} : memref<2x22x22xf32, #tpu.memory_space<vmem>>, vector<1x1x16xf32>,
    %140 = vector.extract_strided_slice %37 {offsets = [0, 192], sizes = [1, 16], strides = [1, 1]} : vector<1x256xf32> to vector<1x16xf32>
    %c1_80 = arith.constant 1 : index
    %c15_81 = arith.constant 15 : index
    %c3_82 = arith.constant 3 : index
    %141 = vector.load %arg6[%c1_80, %c15_81, %c3_82] : memref<2x22x22xf32, #tpu.memory_space<vmem>>, vector<1x1x16xf32>
    %142 = vector.shape_cast %141 : vector<1x1x16xf32> to vector<1x16xf32>
    %143 = vector.shape_cast %140 : vector<1x16xf32> to vector<1x1x16xf32>
    tpu.vector_store %arg6[%c1_80, %c15_81, %c3_82], %143 {strides = array<i32>} : memref<2x22x22xf32, #tpu.memory_space<vmem>>, vector<1x1x16xf32>,
    %144 = vector.extract_strided_slice %35 {offsets = [0, 208], sizes = [1, 16], strides = [1, 1]} : vector<1x256xf32> to vector<1x16xf32>
    %c0_83 = arith.constant 0 : index
    %c16 = arith.constant 16 : index
    %c3_84 = arith.constant 3 : index
    %145 = vector.load %arg6[%c0_83, %c16, %c3_84] : memref<2x22x22xf32, #tpu.memory_space<vmem>>, vector<1x1x16xf32>
    %146 = vector.shape_cast %145 : vector<1x1x16xf32> to vector<1x16xf32>
    %147 = vector.shape_cast %144 : vector<1x16xf32> to vector<1x1x16xf32>
    tpu.vector_store %arg6[%c0_83, %c16, %c3_84], %147 {strides = array<i32>} : memref<2x22x22xf32, #tpu.memory_space<vmem>>, vector<1x1x16xf32>,
    %148 = vector.extract_strided_slice %37 {offsets = [0, 208], sizes = [1, 16], strides = [1, 1]} : vector<1x256xf32> to vector<1x16xf32>
    %c1_85 = arith.constant 1 : index
    %c16_86 = arith.constant 16 : index
    %c3_87 = arith.constant 3 : index
    %149 = vector.load %arg6[%c1_85, %c16_86, %c3_87] : memref<2x22x22xf32, #tpu.memory_space<vmem>>, vector<1x1x16xf32>
    %150 = vector.shape_cast %149 : vector<1x1x16xf32> to vector<1x16xf32>
    %151 = vector.shape_cast %148 : vector<1x16xf32> to vector<1x1x16xf32>
    tpu.vector_store %arg6[%c1_85, %c16_86, %c3_87], %151 {strides = array<i32>} : memref<2x22x22xf32, #tpu.memory_space<vmem>>, vector<1x1x16xf32>,
    %152 = vector.extract_strided_slice %35 {offsets = [0, 224], sizes = [1, 16], strides = [1, 1]} : vector<1x256xf32> to vector<1x16xf32>
    %c0_88 = arith.constant 0 : index
    %c17 = arith.constant 17 : index
    %c3_89 = arith.constant 3 : index
    %153 = vector.load %arg6[%c0_88, %c17, %c3_89] : memref<2x22x22xf32, #tpu.memory_space<vmem>>, vector<1x1x16xf32>
    %154 = vector.shape_cast %153 : vector<1x1x16xf32> to vector<1x16xf32>
    %155 = vector.shape_cast %152 : vector<1x16xf32> to vector<1x1x16xf32>
    tpu.vector_store %arg6[%c0_88, %c17, %c3_89], %155 {strides = array<i32>} : memref<2x22x22xf32, #tpu.memory_space<vmem>>, vector<1x1x16xf32>,
    %156 = vector.extract_strided_slice %37 {offsets = [0, 224], sizes = [1, 16], strides = [1, 1]} : vector<1x256xf32> to vector<1x16xf32>
    %c1_90 = arith.constant 1 : index
    %c17_91 = arith.constant 17 : index
    %c3_92 = arith.constant 3 : index
    %157 = vector.load %arg6[%c1_90, %c17_91, %c3_92] : memref<2x22x22xf32, #tpu.memory_space<vmem>>, vector<1x1x16xf32>
    %158 = vector.shape_cast %157 : vector<1x1x16xf32> to vector<1x16xf32>
    %159 = vector.shape_cast %156 : vector<1x16xf32> to vector<1x1x16xf32>
    tpu.vector_store %arg6[%c1_90, %c17_91, %c3_92], %159 {strides = array<i32>} : memref<2x22x22xf32, #tpu.memory_space<vmem>>, vector<1x1x16xf32>,
    %160 = vector.extract_strided_slice %35 {offsets = [0, 240], sizes = [1, 16], strides = [1, 1]} : vector<1x256xf32> to vector<1x16xf32>
    %c0_93 = arith.constant 0 : index
    %c18 = arith.constant 18 : index
    %c3_94 = arith.constant 3 : index
    %161 = vector.load %arg6[%c0_93, %c18, %c3_94] : memref<2x22x22xf32, #tpu.memory_space<vmem>>, vector<1x1x16xf32>
    %162 = vector.shape_cast %161 : vector<1x1x16xf32> to vector<1x16xf32>
    %163 = vector.shape_cast %160 : vector<1x16xf32> to vector<1x1x16xf32>
    tpu.vector_store %arg6[%c0_93, %c18, %c3_94], %163 {strides = array<i32>} : memref<2x22x22xf32, #tpu.memory_space<vmem>>, vector<1x1x16xf32>,
    %164 = vector.extract_strided_slice %37 {offsets = [0, 240], sizes = [1, 16], strides = [1, 1]} : vector<1x256xf32> to vector<1x16xf32>
    %c1_95 = arith.constant 1 : index
    %c18_96 = arith.constant 18 : index
    %c3_97 = arith.constant 3 : index
    %165 = vector.load %arg6[%c1_95, %c18_96, %c3_97] : memref<2x22x22xf32, #tpu.memory_space<vmem>>, vector<1x1x16xf32>
    %166 = vector.shape_cast %165 : vector<1x1x16xf32> to vector<1x16xf32>
    %167 = vector.shape_cast %164 : vector<1x16xf32> to vector<1x1x16xf32>
    tpu.vector_store %arg6[%c1_95, %c18_96, %c3_97], %167 {strides = array<i32>} : memref<2x22x22xf32, #tpu.memory_space<vmem>>, vector<1x1x16xf32>,
    %c0_98 = arith.constant 0 : index
    %c0_99 = arith.constant 0 : index
    %c0_100 = arith.constant 0 : index
    %c0_101 = arith.constant 0 : index
    %168 = vector.load %arg4[%c0_98, %c0_99, %c0_100, %c0_101] : memref<2x7x22x16xf32, #tpu.memory_space<vmem>>, vector<2x7x22x16xf32>
    %cst_102 = arith.constant 0.000000e+00 : f32
    %169 = vector.broadcast %cst_102 : f32 to vector<16x16xf32>
    %c0_103 = arith.constant 0 : index
    %c0_104 = arith.constant 0 : index
    %c0_105 = arith.constant 0 : index
    %170 = vector.load %arg6[%c0_103, %c0_104, %c0_105] : memref<2x22x22xf32, #tpu.memory_space<vmem>>, vector<1x16x22xf32>
    %171 = vector.shape_cast %170 : vector<1x16x22xf32> to vector<16x22xf32>
    %172 = vector.extract_strided_slice %168 {offsets = [0, 0, 0, 0], sizes = [1, 1, 22, 16], strides = [1, 1, 1, 1]} : vector<2x7x22x16xf32> to vector<1x1x22x16xf32>
    %173 = vector.shape_cast %172 : vector<1x1x22x16xf32> to vector<22x16xf32>
    %cst_106 = arith.constant dense<0.000000e+00> : vector<16x16xf32>
    %174 = tpu.matmul %171, %173, %cst_106 {dimension_numbers = #tpu.dot_dimension_numbers<[1], [0], [0], [1], [0, 0, 1, 1], [], []>} : vector<16x22xf32>, vector<22x16xf32>, vector<16x16xf32> -> vector<16x16xf32>
    %175 = arith.addf %169, %174 : vector<16x16xf32>
    %c0_107 = arith.constant 0 : index
    %c1_108 = arith.constant 1 : index
    %c0_109 = arith.constant 0 : index
    %176 = vector.load %arg6[%c0_107, %c1_108, %c0_109] : memref<2x22x22xf32, #tpu.memory_space<vmem>>, vector<1x16x22xf32>
    %177 = vector.shape_cast %176 : vector<1x16x22xf32> to vector<16x22xf32>
    %178 = vector.extract_strided_slice %168 {offsets = [0, 1, 0, 0], sizes = [1, 1, 22, 16], strides = [1, 1, 1, 1]} : vector<2x7x22x16xf32> to vector<1x1x22x16xf32>
    %179 = vector.shape_cast %178 : vector<1x1x22x16xf32> to vector<22x16xf32>
    %cst_110 = arith.constant dense<0.000000e+00> : vector<16x16xf32>
    %180 = tpu.matmul %177, %179, %cst_110 {dimension_numbers = #tpu.dot_dimension_numbers<[1], [0], [0], [1], [0, 0, 1, 1], [], []>} : vector<16x22xf32>, vector<22x16xf32>, vector<16x16xf32> -> vector<16x16xf32>
    %181 = arith.addf %175, %180 : vector<16x16xf32>
    %c0_111 = arith.constant 0 : index
    %c2 = arith.constant 2 : index
    %c0_112 = arith.constant 0 : index
    %182 = vector.load %arg6[%c0_111, %c2, %c0_112] : memref<2x22x22xf32, #tpu.memory_space<vmem>>, vector<1x16x22xf32>
    %183 = vector.shape_cast %182 : vector<1x16x22xf32> to vector<16x22xf32>
    %184 = vector.extract_strided_slice %168 {offsets = [0, 2, 0, 0], sizes = [1, 1, 22, 16], strides = [1, 1, 1, 1]} : vector<2x7x22x16xf32> to vector<1x1x22x16xf32>
    %185 = vector.shape_cast %184 : vector<1x1x22x16xf32> to vector<22x16xf32>
    %cst_113 = arith.constant dense<0.000000e+00> : vector<16x16xf32>
    %186 = tpu.matmul %183, %185, %cst_113 {dimension_numbers = #tpu.dot_dimension_numbers<[1], [0], [0], [1], [0, 0, 1, 1], [], []>} : vector<16x22xf32>, vector<22x16xf32>, vector<16x16xf32> -> vector<16x16xf32>
    %187 = arith.addf %181, %186 : vector<16x16xf32>
    %c0_114 = arith.constant 0 : index
    %c3_115 = arith.constant 3 : index
    %c0_116 = arith.constant 0 : index
    %188 = vector.load %arg6[%c0_114, %c3_115, %c0_116] : memref<2x22x22xf32, #tpu.memory_space<vmem>>, vector<1x16x22xf32>
    %189 = vector.shape_cast %188 : vector<1x16x22xf32> to vector<16x22xf32>
    %190 = vector.extract_strided_slice %168 {offsets = [0, 3, 0, 0], sizes = [1, 1, 22, 16], strides = [1, 1, 1, 1]} : vector<2x7x22x16xf32> to vector<1x1x22x16xf32>
    %191 = vector.shape_cast %190 : vector<1x1x22x16xf32> to vector<22x16xf32>
    %cst_117 = arith.constant dense<0.000000e+00> : vector<16x16xf32>
    %192 = tpu.matmul %189, %191, %cst_117 {dimension_numbers = #tpu.dot_dimension_numbers<[1], [0], [0], [1], [0, 0, 1, 1], [], []>} : vector<16x22xf32>, vector<22x16xf32>, vector<16x16xf32> -> vector<16x16xf32>
    %193 = arith.addf %187, %192 : vector<16x16xf32>
    %c0_118 = arith.constant 0 : index
    %c4_119 = arith.constant 4 : index
    %c0_120 = arith.constant 0 : index
    %194 = vector.load %arg6[%c0_118, %c4_119, %c0_120] : memref<2x22x22xf32, #tpu.memory_space<vmem>>, vector<1x16x22xf32>
    %195 = vector.shape_cast %194 : vector<1x16x22xf32> to vector<16x22xf32>
    %196 = vector.extract_strided_slice %168 {offsets = [0, 4, 0, 0], sizes = [1, 1, 22, 16], strides = [1, 1, 1, 1]} : vector<2x7x22x16xf32> to vector<1x1x22x16xf32>
    %197 = vector.shape_cast %196 : vector<1x1x22x16xf32> to vector<22x16xf32>
    %cst_121 = arith.constant dense<0.000000e+00> : vector<16x16xf32>
    %198 = tpu.matmul %195, %197, %cst_121 {dimension_numbers = #tpu.dot_dimension_numbers<[1], [0], [0], [1], [0, 0, 1, 1], [], []>} : vector<16x22xf32>, vector<22x16xf32>, vector<16x16xf32> -> vector<16x16xf32>
    %199 = arith.addf %193, %198 : vector<16x16xf32>
    %c0_122 = arith.constant 0 : index
    %c5_123 = arith.constant 5 : index
    %c0_124 = arith.constant 0 : index
    %200 = vector.load %arg6[%c0_122, %c5_123, %c0_124] : memref<2x22x22xf32, #tpu.memory_space<vmem>>, vector<1x16x22xf32>
    %201 = vector.shape_cast %200 : vector<1x16x22xf32> to vector<16x22xf32>
    %202 = vector.extract_strided_slice %168 {offsets = [0, 5, 0, 0], sizes = [1, 1, 22, 16], strides = [1, 1, 1, 1]} : vector<2x7x22x16xf32> to vector<1x1x22x16xf32>
    %203 = vector.shape_cast %202 : vector<1x1x22x16xf32> to vector<22x16xf32>
    %cst_125 = arith.constant dense<0.000000e+00> : vector<16x16xf32>
    %204 = tpu.matmul %201, %203, %cst_125 {dimension_numbers = #tpu.dot_dimension_numbers<[1], [0], [0], [1], [0, 0, 1, 1], [], []>} : vector<16x22xf32>, vector<22x16xf32>, vector<16x16xf32> -> vector<16x16xf32>
    %205 = arith.addf %199, %204 : vector<16x16xf32>
    %c0_126 = arith.constant 0 : index
    %c6_127 = arith.constant 6 : index
    %c0_128 = arith.constant 0 : index
    %206 = vector.load %arg6[%c0_126, %c6_127, %c0_128] : memref<2x22x22xf32, #tpu.memory_space<vmem>>, vector<1x16x22xf32>
    %207 = vector.shape_cast %206 : vector<1x16x22xf32> to vector<16x22xf32>
    %208 = vector.extract_strided_slice %168 {offsets = [0, 6, 0, 0], sizes = [1, 1, 22, 16], strides = [1, 1, 1, 1]} : vector<2x7x22x16xf32> to vector<1x1x22x16xf32>
    %209 = vector.shape_cast %208 : vector<1x1x22x16xf32> to vector<22x16xf32>
    %cst_129 = arith.constant dense<0.000000e+00> : vector<16x16xf32>
    %210 = tpu.matmul %207, %209, %cst_129 {dimension_numbers = #tpu.dot_dimension_numbers<[1], [0], [0], [1], [0, 0, 1, 1], [], []>} : vector<16x22xf32>, vector<22x16xf32>, vector<16x16xf32> -> vector<16x16xf32>
    %211 = arith.addf %205, %210 : vector<16x16xf32>
    %c1_130 = arith.constant 1 : index
    %c0_131 = arith.constant 0 : index
    %c0_132 = arith.constant 0 : index
    %212 = vector.load %arg6[%c1_130, %c0_131, %c0_132] : memref<2x22x22xf32, #tpu.memory_space<vmem>>, vector<1x16x22xf32>
    %213 = vector.shape_cast %212 : vector<1x16x22xf32> to vector<16x22xf32>
    %214 = vector.extract_strided_slice %168 {offsets = [1, 0, 0, 0], sizes = [1, 1, 22, 16], strides = [1, 1, 1, 1]} : vector<2x7x22x16xf32> to vector<1x1x22x16xf32>
    %215 = vector.shape_cast %214 : vector<1x1x22x16xf32> to vector<22x16xf32>
    %cst_133 = arith.constant dense<0.000000e+00> : vector<16x16xf32>
    %216 = tpu.matmul %213, %215, %cst_133 {dimension_numbers = #tpu.dot_dimension_numbers<[1], [0], [0], [1], [0, 0, 1, 1], [], []>} : vector<16x22xf32>, vector<22x16xf32>, vector<16x16xf32> -> vector<16x16xf32>
    %217 = arith.addf %211, %216 : vector<16x16xf32>
    %c1_134 = arith.constant 1 : index
    %c1_135 = arith.constant 1 : index
    %c0_136 = arith.constant 0 : index
    %218 = vector.load %arg6[%c1_134, %c1_135, %c0_136] : memref<2x22x22xf32, #tpu.memory_space<vmem>>, vector<1x16x22xf32>
    %219 = vector.shape_cast %218 : vector<1x16x22xf32> to vector<16x22xf32>
    %220 = vector.extract_strided_slice %168 {offsets = [1, 1, 0, 0], sizes = [1, 1, 22, 16], strides = [1, 1, 1, 1]} : vector<2x7x22x16xf32> to vector<1x1x22x16xf32>
    %221 = vector.shape_cast %220 : vector<1x1x22x16xf32> to vector<22x16xf32>
    %cst_137 = arith.constant dense<0.000000e+00> : vector<16x16xf32>
    %222 = tpu.matmul %219, %221, %cst_137 {dimension_numbers = #tpu.dot_dimension_numbers<[1], [0], [0], [1], [0, 0, 1, 1], [], []>} : vector<16x22xf32>, vector<22x16xf32>, vector<16x16xf32> -> vector<16x16xf32>
    %223 = arith.addf %217, %222 : vector<16x16xf32>
    %c1_138 = arith.constant 1 : index
    %c2_139 = arith.constant 2 : index
    %c0_140 = arith.constant 0 : index
    %224 = vector.load %arg6[%c1_138, %c2_139, %c0_140] : memref<2x22x22xf32, #tpu.memory_space<vmem>>, vector<1x16x22xf32>
    %225 = vector.shape_cast %224 : vector<1x16x22xf32> to vector<16x22xf32>
    %226 = vector.extract_strided_slice %168 {offsets = [1, 2, 0, 0], sizes = [1, 1, 22, 16], strides = [1, 1, 1, 1]} : vector<2x7x22x16xf32> to vector<1x1x22x16xf32>
    %227 = vector.shape_cast %226 : vector<1x1x22x16xf32> to vector<22x16xf32>
    %cst_141 = arith.constant dense<0.000000e+00> : vector<16x16xf32>
    %228 = tpu.matmul %225, %227, %cst_141 {dimension_numbers = #tpu.dot_dimension_numbers<[1], [0], [0], [1], [0, 0, 1, 1], [], []>} : vector<16x22xf32>, vector<22x16xf32>, vector<16x16xf32> -> vector<16x16xf32>
    %229 = arith.addf %223, %228 : vector<16x16xf32>
    %c1_142 = arith.constant 1 : index
    %c3_143 = arith.constant 3 : index
    %c0_144 = arith.constant 0 : index
    %230 = vector.load %arg6[%c1_142, %c3_143, %c0_144] : memref<2x22x22xf32, #tpu.memory_space<vmem>>, vector<1x16x22xf32>
    %231 = vector.shape_cast %230 : vector<1x16x22xf32> to vector<16x22xf32>
    %232 = vector.extract_strided_slice %168 {offsets = [1, 3, 0, 0], sizes = [1, 1, 22, 16], strides = [1, 1, 1, 1]} : vector<2x7x22x16xf32> to vector<1x1x22x16xf32>
    %233 = vector.shape_cast %232 : vector<1x1x22x16xf32> to vector<22x16xf32>
    %cst_145 = arith.constant dense<0.000000e+00> : vector<16x16xf32>
    %234 = tpu.matmul %231, %233, %cst_145 {dimension_numbers = #tpu.dot_dimension_numbers<[1], [0], [0], [1], [0, 0, 1, 1], [], []>} : vector<16x22xf32>, vector<22x16xf32>, vector<16x16xf32> -> vector<16x16xf32>
    %235 = arith.addf %229, %234 : vector<16x16xf32>
    %c1_146 = arith.constant 1 : index
    %c4_147 = arith.constant 4 : index
    %c0_148 = arith.constant 0 : index
    %236 = vector.load %arg6[%c1_146, %c4_147, %c0_148] : memref<2x22x22xf32, #tpu.memory_space<vmem>>, vector<1x16x22xf32>
    %237 = vector.shape_cast %236 : vector<1x16x22xf32> to vector<16x22xf32>
    %238 = vector.extract_strided_slice %168 {offsets = [1, 4, 0, 0], sizes = [1, 1, 22, 16], strides = [1, 1, 1, 1]} : vector<2x7x22x16xf32> to vector<1x1x22x16xf32>
    %239 = vector.shape_cast %238 : vector<1x1x22x16xf32> to vector<22x16xf32>
    %cst_149 = arith.constant dense<0.000000e+00> : vector<16x16xf32>
    %240 = tpu.matmul %237, %239, %cst_149 {dimension_numbers = #tpu.dot_dimension_numbers<[1], [0], [0], [1], [0, 0, 1, 1], [], []>} : vector<16x22xf32>, vector<22x16xf32>, vector<16x16xf32> -> vector<16x16xf32>
    %241 = arith.addf %235, %240 : vector<16x16xf32>
    %c1_150 = arith.constant 1 : index
    %c5_151 = arith.constant 5 : index
    %c0_152 = arith.constant 0 : index
    %242 = vector.load %arg6[%c1_150, %c5_151, %c0_152] : memref<2x22x22xf32, #tpu.memory_space<vmem>>, vector<1x16x22xf32>
    %243 = vector.shape_cast %242 : vector<1x16x22xf32> to vector<16x22xf32>
    %244 = vector.extract_strided_slice %168 {offsets = [1, 5, 0, 0], sizes = [1, 1, 22, 16], strides = [1, 1, 1, 1]} : vector<2x7x22x16xf32> to vector<1x1x22x16xf32>
    %245 = vector.shape_cast %244 : vector<1x1x22x16xf32> to vector<22x16xf32>
    %cst_153 = arith.constant dense<0.000000e+00> : vector<16x16xf32>
    %246 = tpu.matmul %243, %245, %cst_153 {dimension_numbers = #tpu.dot_dimension_numbers<[1], [0], [0], [1], [0, 0, 1, 1], [], []>} : vector<16x22xf32>, vector<22x16xf32>, vector<16x16xf32> -> vector<16x16xf32>
    %247 = arith.addf %241, %246 : vector<16x16xf32>
    %c1_154 = arith.constant 1 : index
    %c6_155 = arith.constant 6 : index
    %c0_156 = arith.constant 0 : index
    %248 = vector.load %arg6[%c1_154, %c6_155, %c0_156] : memref<2x22x22xf32, #tpu.memory_space<vmem>>, vector<1x16x22xf32>
    %249 = vector.shape_cast %248 : vector<1x16x22xf32> to vector<16x22xf32>
    %250 = vector.extract_strided_slice %168 {offsets = [1, 6, 0, 0], sizes = [1, 1, 22, 16], strides = [1, 1, 1, 1]} : vector<2x7x22x16xf32> to vector<1x1x22x16xf32>
    %251 = vector.shape_cast %250 : vector<1x1x22x16xf32> to vector<22x16xf32>
    %cst_157 = arith.constant dense<0.000000e+00> : vector<16x16xf32>
    %252 = tpu.matmul %249, %251, %cst_157 {dimension_numbers = #tpu.dot_dimension_numbers<[1], [0], [0], [1], [0, 0, 1, 1], [], []>} : vector<16x22xf32>, vector<22x16xf32>, vector<16x16xf32> -> vector<16x16xf32>
    %253 = arith.addf %247, %252 : vector<16x16xf32>
    %254 = arith.negf %253 : vector<16x16xf32>
    %255 = math.exp %254 : vector<16x16xf32>
    %cst_158 = arith.constant 1.000000e+00 : f32
    %256 = vector.broadcast %cst_158 : f32 to vector<16x16xf32>
    %257 = arith.addf %256, %255 : vector<16x16xf32>
    %258 = arith.divf %256, %257 : vector<16x16xf32>
    %259 = vector.extract_strided_slice %258 {offsets = [0, 0], sizes = [1, 16], strides = [1, 1]} : vector<16x16xf32> to vector<1x16xf32>
    %c0_159 = arith.constant 0 : index
    %c0_160 = arith.constant 0 : index
    %260 = vector.load %arg7[%c0_159, %c0_160] : memref<1x256xf32, #tpu.memory_space<vmem>>, vector<1x16xf32>
    tpu.vector_store %arg7[%c0_159, %c0_160], %259 {strides = array<i32>} : memref<1x256xf32, #tpu.memory_space<vmem>>, vector<1x16xf32>,
    %261 = vector.extract_strided_slice %258 {offsets = [1, 0], sizes = [1, 16], strides = [1, 1]} : vector<16x16xf32> to vector<1x16xf32>
    %c0_161 = arith.constant 0 : index
    %c16_162 = arith.constant 16 : index
    %262 = vector.load %arg7[%c0_161, %c16_162] : memref<1x256xf32, #tpu.memory_space<vmem>>, vector<1x16xf32>
    tpu.vector_store %arg7[%c0_161, %c16_162], %261 {strides = array<i32>} : memref<1x256xf32, #tpu.memory_space<vmem>>, vector<1x16xf32>,
    %263 = vector.extract_strided_slice %258 {offsets = [2, 0], sizes = [1, 16], strides = [1, 1]} : vector<16x16xf32> to vector<1x16xf32>
    %c0_163 = arith.constant 0 : index
    %c32 = arith.constant 32 : index
    %264 = vector.load %arg7[%c0_163, %c32] : memref<1x256xf32, #tpu.memory_space<vmem>>, vector<1x16xf32>
    tpu.vector_store %arg7[%c0_163, %c32], %263 {strides = array<i32>} : memref<1x256xf32, #tpu.memory_space<vmem>>, vector<1x16xf32>,
    %265 = vector.extract_strided_slice %258 {offsets = [3, 0], sizes = [1, 16], strides = [1, 1]} : vector<16x16xf32> to vector<1x16xf32>
    %c0_164 = arith.constant 0 : index
    %c48 = arith.constant 48 : index
    %266 = vector.load %arg7[%c0_164, %c48] : memref<1x256xf32, #tpu.memory_space<vmem>>, vector<1x16xf32>
    tpu.vector_store %arg7[%c0_164, %c48], %265 {strides = array<i32>} : memref<1x256xf32, #tpu.memory_space<vmem>>, vector<1x16xf32>,
    %267 = vector.extract_strided_slice %258 {offsets = [4, 0], sizes = [1, 16], strides = [1, 1]} : vector<16x16xf32> to vector<1x16xf32>
    %c0_165 = arith.constant 0 : index
    %c64 = arith.constant 64 : index
    %268 = vector.load %arg7[%c0_165, %c64] : memref<1x256xf32, #tpu.memory_space<vmem>>, vector<1x16xf32>
    tpu.vector_store %arg7[%c0_165, %c64], %267 {strides = array<i32>} : memref<1x256xf32, #tpu.memory_space<vmem>>, vector<1x16xf32>,
    %269 = vector.extract_strided_slice %258 {offsets = [5, 0], sizes = [1, 16], strides = [1, 1]} : vector<16x16xf32> to vector<1x16xf32>
    %c0_166 = arith.constant 0 : index
    %c80 = arith.constant 80 : index
    %270 = vector.load %arg7[%c0_166, %c80] : memref<1x256xf32, #tpu.memory_space<vmem>>, vector<1x16xf32>
    tpu.vector_store %arg7[%c0_166, %c80], %269 {strides = array<i32>} : memref<1x256xf32, #tpu.memory_space<vmem>>, vector<1x16xf32>,
    %271 = vector.extract_strided_slice %258 {offsets = [6, 0], sizes = [1, 16], strides = [1, 1]} : vector<16x16xf32> to vector<1x16xf32>
    %c0_167 = arith.constant 0 : index
    %c96 = arith.constant 96 : index
    %272 = vector.load %arg7[%c0_167, %c96] : memref<1x256xf32, #tpu.memory_space<vmem>>, vector<1x16xf32>
    tpu.vector_store %arg7[%c0_167, %c96], %271 {strides = array<i32>} : memref<1x256xf32, #tpu.memory_space<vmem>>, vector<1x16xf32>,
    %273 = vector.extract_strided_slice %258 {offsets = [7, 0], sizes = [1, 16], strides = [1, 1]} : vector<16x16xf32> to vector<1x16xf32>
    %c0_168 = arith.constant 0 : index
    %c112 = arith.constant 112 : index
    %274 = vector.load %arg7[%c0_168, %c112] : memref<1x256xf32, #tpu.memory_space<vmem>>, vector<1x16xf32>
    tpu.vector_store %arg7[%c0_168, %c112], %273 {strides = array<i32>} : memref<1x256xf32, #tpu.memory_space<vmem>>, vector<1x16xf32>,
    %275 = vector.extract_strided_slice %258 {offsets = [8, 0], sizes = [1, 16], strides = [1, 1]} : vector<16x16xf32> to vector<1x16xf32>
    %c0_169 = arith.constant 0 : index
    %c128 = arith.constant 128 : index
    %276 = vector.load %arg7[%c0_169, %c128] : memref<1x256xf32, #tpu.memory_space<vmem>>, vector<1x16xf32>
    tpu.vector_store %arg7[%c0_169, %c128], %275 {strides = array<i32>} : memref<1x256xf32, #tpu.memory_space<vmem>>, vector<1x16xf32>,
    %277 = vector.extract_strided_slice %258 {offsets = [9, 0], sizes = [1, 16], strides = [1, 1]} : vector<16x16xf32> to vector<1x16xf32>
    %c0_170 = arith.constant 0 : index
    %c144 = arith.constant 144 : index
    %278 = vector.load %arg7[%c0_170, %c144] : memref<1x256xf32, #tpu.memory_space<vmem>>, vector<1x16xf32>
    tpu.vector_store %arg7[%c0_170, %c144], %277 {strides = array<i32>} : memref<1x256xf32, #tpu.memory_space<vmem>>, vector<1x16xf32>,
    %279 = vector.extract_strided_slice %258 {offsets = [10, 0], sizes = [1, 16], strides = [1, 1]} : vector<16x16xf32> to vector<1x16xf32>
    %c0_171 = arith.constant 0 : index
    %c160 = arith.constant 160 : index
    %280 = vector.load %arg7[%c0_171, %c160] : memref<1x256xf32, #tpu.memory_space<vmem>>, vector<1x16xf32>
    tpu.vector_store %arg7[%c0_171, %c160], %279 {strides = array<i32>} : memref<1x256xf32, #tpu.memory_space<vmem>>, vector<1x16xf32>,
    %281 = vector.extract_strided_slice %258 {offsets = [11, 0], sizes = [1, 16], strides = [1, 1]} : vector<16x16xf32> to vector<1x16xf32>
    %c0_172 = arith.constant 0 : index
    %c176 = arith.constant 176 : index
    %282 = vector.load %arg7[%c0_172, %c176] : memref<1x256xf32, #tpu.memory_space<vmem>>, vector<1x16xf32>
    tpu.vector_store %arg7[%c0_172, %c176], %281 {strides = array<i32>} : memref<1x256xf32, #tpu.memory_space<vmem>>, vector<1x16xf32>,
    %283 = vector.extract_strided_slice %258 {offsets = [12, 0], sizes = [1, 16], strides = [1, 1]} : vector<16x16xf32> to vector<1x16xf32>
    %c0_173 = arith.constant 0 : index
    %c192 = arith.constant 192 : index
    %284 = vector.load %arg7[%c0_173, %c192] : memref<1x256xf32, #tpu.memory_space<vmem>>, vector<1x16xf32>
    tpu.vector_store %arg7[%c0_173, %c192], %283 {strides = array<i32>} : memref<1x256xf32, #tpu.memory_space<vmem>>, vector<1x16xf32>,
    %285 = vector.extract_strided_slice %258 {offsets = [13, 0], sizes = [1, 16], strides = [1, 1]} : vector<16x16xf32> to vector<1x16xf32>
    %c0_174 = arith.constant 0 : index
    %c208 = arith.constant 208 : index
    %286 = vector.load %arg7[%c0_174, %c208] : memref<1x256xf32, #tpu.memory_space<vmem>>, vector<1x16xf32>
    tpu.vector_store %arg7[%c0_174, %c208], %285 {strides = array<i32>} : memref<1x256xf32, #tpu.memory_space<vmem>>, vector<1x16xf32>,
    %287 = vector.extract_strided_slice %258 {offsets = [14, 0], sizes = [1, 16], strides = [1, 1]} : vector<16x16xf32> to vector<1x16xf32>
    %c0_175 = arith.constant 0 : index
    %c224 = arith.constant 224 : index
    %288 = vector.load %arg7[%c0_175, %c224] : memref<1x256xf32, #tpu.memory_space<vmem>>, vector<1x16xf32>
    tpu.vector_store %arg7[%c0_175, %c224], %287 {strides = array<i32>} : memref<1x256xf32, #tpu.memory_space<vmem>>, vector<1x16xf32>,
    %289 = vector.extract_strided_slice %258 {offsets = [15, 0], sizes = [1, 16], strides = [1, 1]} : vector<16x16xf32> to vector<1x16xf32>
    %c0_176 = arith.constant 0 : index
    %c240 = arith.constant 240 : index
    %290 = vector.load %arg7[%c0_176, %c240] : memref<1x256xf32, #tpu.memory_space<vmem>>, vector<1x16xf32>
    tpu.vector_store %arg7[%c0_176, %c240], %289 {strides = array<i32>} : memref<1x256xf32, #tpu.memory_space<vmem>>, vector<1x16xf32>,
    %c0_177 = arith.constant 0 : index
    %c0_178 = arith.constant 0 : index
    %291 = vector.load %arg7[%c0_177, %c0_178] : memref<1x256xf32, #tpu.memory_space<vmem>>, vector<1x256xf32>
    %292 = vector.broadcast %291 : vector<1x256xf32> to vector<32x256xf32>
    %293 = arith.mulf %31, %292 : vector<32x256xf32>
    %c0_179 = arith.constant 0 : index
    %c0_180 = arith.constant 0 : index
    %c0_181 = arith.constant 0 : index
    %294 = vector.load %arg5[%c0_179, %c0_180, %c0_181] : memref<1x32x256xf32, #tpu.memory_space<vmem>>, vector<1x32x256xf32>
    %295 = vector.shape_cast %294 : vector<1x32x256xf32> to vector<32x256xf32>
    %296 = vector.shape_cast %293 : vector<32x256xf32> to vector<1x32x256xf32>
    tpu.vector_store %arg5[%c0_179, %c0_180, %c0_181], %296 {strides = array<i32>} : memref<1x32x256xf32, #tpu.memory_space<vmem>>, vector<1x32x256xf32>,
    return
  }
  func.func @transform_0(%arg0: i32) -> (i32, i32, i32) {
    %c0_i32 = arith.constant 0 : i32
    %c0_i32_0 = arith.constant 0 : i32
    %c0_i32_1 = arith.constant 0 : i32
    return %arg0, %c0_i32, %c0_i32_0 : i32, i32, i32
  }
  func.func @transform_1(%arg0: i32) -> (i32, i32) {
    %c0_i32 = arith.constant 0 : i32
    %c0_i32_0 = arith.constant 0 : i32
    %c0_i32_1 = arith.constant 0 : i32
    return %c0_i32, %c0_i32_0 : i32, i32
  }
  func.func @transform_2(%arg0: i32) -> (i32, i32) {
    %c0_i32 = arith.constant 0 : i32
    %c0_i32_0 = arith.constant 0 : i32
    %c0_i32_1 = arith.constant 0 : i32
    return %c0_i32, %c0_i32_0 : i32, i32
  }
  func.func @transform_3(%arg0: i32) -> (i32, i32, i32, i32) {
    %c0_i32 = arith.constant 0 : i32
    %c0_i32_0 = arith.constant 0 : i32
    %c0_i32_1 = arith.constant 0 : i32
    %c0_i32_2 = arith.constant 0 : i32
    %c0_i32_3 = arith.constant 0 : i32
    return %c0_i32, %c0_i32_0, %c0_i32_1, %c0_i32_2 : i32, i32, i32, i32
  }
  func.func @transform_4(%arg0: i32) -> (i32, i32, i32) {
    %c0_i32 = arith.constant 0 : i32
    %c0_i32_0 = arith.constant 0 : i32
    %c0_i32_1 = arith.constant 0 : i32
    return %arg0, %c0_i32, %c0_i32_0 : i32, i32, i32
  }
}

</mosaic_0001>

<llo_original>
// kernel: tpu_custom_call.1
$region0: #{tpu_custom_call.1}
  #allocation0 [shape = 'u32[]', space=smem, size = 0x4, offset = 0x4, fixed_abs, tag = 'smem constant byte address 0x4 - core index']
  #allocation1 [shape = 'u32[144,128]{1,0:T(1,128)}', space=vmem, size = 0x12000, scoped, tag = 'internal scratch']
  #allocation2 [shape = 'f32[2,22,22]{2,1,0:T(8,128)}', space=vmem, size = 0x6000, scoped, tag = 'scratch operand']
  #allocation3 [shape = 'f32[1,256]{1,0:T(1,128)}', space=vmem, size = 0x400, scoped, tag = 'scratch operand']
  %s0 = inlined_call_operand.vmem [shape: f32[2,32,256], index: 0, kind: input, shape index: {}]
  %s1 = inlined_call_operand.vmem [shape: f32[2,32], index: 1, kind: input, shape index: {}]
  %s2 = inlined_call_operand.vmem [shape: f32[32,2], index: 2, kind: input, shape index: {}]
  %s3 = inlined_call_operand.vmem [shape: f32[2,7,22,16], index: 3, kind: input, shape index: {}]
  %s4 = inlined_call_operand.hbm [shape: f32[2,32,256], index: 4, kind: output, shape index: {}]
  %s5 = sld [smem:[#allocation0]]
  $region49: #{tpu_custom_call.1} parent=0
    _
  %s7 = ssub.s32 1, %s5
  %s8 = scalar_select 0, %s7, %s5
  $region1: #{tpu_custom_call.1} parent=0
    #allocation4 [shape = 'u8[65536]{0}', space=vmem, size = 0x10000, scoped, tag = 'output window, operand 0']
    #allocation5 [shape = 's32[2]{0}', space=sflag, size = 0x8, scoped, tag = 'scoped memory for tpu_custom_call.1']
    %9 = vsyncpa [#allocation5], 0
    %s10 = scalar_lea.sflag [#allocation5], 1
    %11 = vsyncpa %s10, 0
    loop: start=0, step=1, limit=4
    $region2: #{tpu_custom_call.1} parent=1 // loop_pre_header
      _
    $region3: #{tpu_custom_call.1} parent=1 // loop_header
      %s13 = sphi 0, %s17
      %p14 = scmp.ge.s32.totalorder %s13, 4
      %s23 = sphi 0, %s25
      %s26 = sphi 0, %s23
      %s27 = sphi 0, %s26
      %s43 = sphi 0, %s27
      %s47 = sphi 0, %s47
      %s49 = sphi 0, %s47
      %s50 = sphi 0, %s49
      %s64 = sphi 0, %s50
      %s68 = sphi 0, %s68
      %s70 = sphi 0, %s68
      %s71 = sphi 0, %s70
      %s85 = sphi 0, %s71
      %s89 = sphi 0, %s89
      %s91 = sphi 0, %s89
      %s92 = sphi 0, %s91
      %s106 = sphi 0, %s92
      %s112 = sphi 0, %s114
      %s115 = sphi 0, %s112
      %s116 = sphi 0, %s115
      %s132 = sphi 0, %s116
    $region4: #{tpu_custom_call.1} parent=1 // loop_header_branch
      %16 = sbr.rel (%p14) target = $region8
    $region5: #{tpu_custom_call.1} parent=1 // loop_body
      %s18 = ssub.s32 %s13, 1
      %s19 = ssub.s32 %s13, 2
      %s20 = sadd.s32 %s13, 1
      %s21 = ssub.s32 %s13, %s20
      %p22 = scmp.eq.s32.totalorder %s21, 0
      %s24 = sadd.s32 %s23, 1
      %s25 = scalar_select %p22, %s23, %s24
      %p28 = pneg %p22
      %p29 = scmp.eq.s32.totalorder %s13, 1
      %p30 = por %p28, %p29
      %p31 = scmp.ne.s32.totalorder %s23, %s26
      %p32 = scmp.eq.s32.totalorder %s13, 0
      %p33 = por %p31, %p32
      %p34 = scmp.ne.s32.totalorder %s23, %s26
      %p35 = scmp.eq.s32.totalorder %s18, 1
      %p36 = por %p34, %p35
      %p37 = scmp.ne.s32.totalorder %s26, %s27
      %p38 = scmp.eq.s32.totalorder %s18, 0
      %p39 = por %p37, %p38
      %p40 = scmp.ne.s32.totalorder %s26, %s27
      %p41 = scmp.eq.s32.totalorder %s19, 1
      %p42 = por %p40, %p41
      %p44 = scmp.ne.s32.totalorder %s27, %s43
      %p45 = scmp.eq.s32.totalorder %s19, 0
      %p46 = por %p44, %p45
      %s48 = sadd.s32 %s47, 1
      %p51 = scmp.eq.s32.totalorder %s13, 1
      %p52 = scmp.ne.s32.totalorder %s47, %s49
      %p53 = scmp.eq.s32.totalorder %s13, 0
      %p54 = por %p52, %p53
      %p55 = scmp.ne.s32.totalorder %s47, %s49
      %p56 = scmp.eq.s32.totalorder %s18, 1
      %p57 = por %p55, %p56
      %p58 = scmp.ne.s32.totalorder %s49, %s50
      %p59 = scmp.eq.s32.totalorder %s18, 0
      %p60 = por %p58, %p59
      %p61 = scmp.ne.s32.totalorder %s49, %s50
      %p62 = scmp.eq.s32.totalorder %s19, 1
      %p63 = por %p61, %p62
      %p65 = scmp.ne.s32.totalorder %s50, %s64
      %p66 = scmp.eq.s32.totalorder %s19, 0
      %p67 = por %p65, %p66
      %s69 = sadd.s32 %s68, 1
      %p72 = scmp.eq.s32.totalorder %s13, 1
      %p73 = scmp.ne.s32.totalorder %s68, %s70
      %p74 = scmp.eq.s32.totalorder %s13, 0
      %p75 = por %p73, %p74
      %p76 = scmp.ne.s32.totalorder %s68, %s70
      %p77 = scmp.eq.s32.totalorder %s18, 1
      %p78 = por %p76, %p77
      %p79 = scmp.ne.s32.totalorder %s70, %s71
      %p80 = scmp.eq.s32.totalorder %s18, 0
      %p81 = por %p79, %p80
      %p82 = scmp.ne.s32.totalorder %s70, %s71
      %p83 = scmp.eq.s32.totalorder %s19, 1
      %p84 = por %p82, %p83
      %p86 = scmp.ne.s32.totalorder %s71, %s85
      %p87 = scmp.eq.s32.totalorder %s19, 0
      %p88 = por %p86, %p87
      %s90 = sadd.s32 %s89, 1
      %p93 = scmp.eq.s32.totalorder %s13, 1
      %p94 = scmp.ne.s32.totalorder %s89, %s91
      %p95 = scmp.eq.s32.totalorder %s13, 0
      %p96 = por %p94, %p95
      %p97 = scmp.ne.s32.totalorder %s89, %s91
      %p98 = scmp.eq.s32.totalorder %s18, 1
      %p99 = por %p97, %p98
      %p100 = scmp.ne.s32.totalorder %s91, %s92
      %p101 = scmp.eq.s32.totalorder %s18, 0
      %p102 = por %p100, %p101
      %p103 = scmp.ne.s32.totalorder %s91, %s92
      %p104 = scmp.eq.s32.totalorder %s19, 1
      %p105 = por %p103, %p104
      %p107 = scmp.ne.s32.totalorder %s92, %s106
      %p108 = scmp.eq.s32.totalorder %s19, 0
      %p109 = por %p107, %p108
      %s110 = ssub.s32 %s13, %s20
      %p111 = scmp.eq.s32.totalorder %s110, 0
      %s113 = sadd.s32 %s112, 1
      %s114 = scalar_select %p111, %s112, %s113
      %p117 = pneg %p111
      %p118 = scmp.eq.s32.totalorder %s13, 1
      %p119 = por %p117, %p118
      %p120 = scmp.ne.s32.totalorder %s112, %s115
      %p121 = scmp.eq.s32.totalorder %s13, 0
      %p122 = por %p120, %p121
      %p123 = scmp.ne.s32.totalorder %s112, %s115
      %p124 = scmp.eq.s32.totalorder %s18, 1
      %p125 = por %p123, %p124
      %p126 = scmp.ne.s32.totalorder %s115, %s116
      %p127 = scmp.eq.s32.totalorder %s18, 0
      %p128 = por %p126, %p127
      %p129 = scmp.ne.s32.totalorder %s115, %s116
      %p130 = scmp.eq.s32.totalorder %s19, 1
      %p131 = por %p129, %p130
      %p133 = scmp.ne.s32.totalorder %s116, %s132
      %p134 = scmp.eq.s32.totalorder %s19, 0
      %p135 = por %p133, %p134
      %p136 = scmp.le.s32.totalorder 1, %s13
      %p137 = scmp.lt.s32.totalorder %s13, 3
      %p138 = pnand %p136, %p137
      %p139 = pneg %p138
      // Predicated region
      $region9: #{tpu_custom_call.1} parent=5 // pred_check
        _
      $region10: #{tpu_custom_call.1} parent=5 // pred_check_branch
        %141 = sbr.rel (%p138) target = $region12
      $region11: #{tpu_custom_call.1} parent=5 // pred_region
        %s142 = ssub.s32 %s13, 1
        // Predicated region
        $region13: #{tpu_custom_call.1} parent=11 // pred_check
          %p143 = pneg %p60
        $region14: #{tpu_custom_call.1} parent=11 // pred_check_branch
          %145 = sbr.rel (%p143) target = $region16
        $region15: #{tpu_custom_call.1} parent=11 // pred_region
          _
        $region16: #{tpu_custom_call.1} parent=11 // pred_fallthru
          _
        // Predicated region
        $region17: #{tpu_custom_call.1} parent=11 // pred_check
          %p146 = pneg %p81
        $region18: #{tpu_custom_call.1} parent=11 // pred_check_branch
          %148 = sbr.rel (%p146) target = $region20
        $region19: #{tpu_custom_call.1} parent=11 // pred_region
          _
        $region20: #{tpu_custom_call.1} parent=11 // pred_fallthru
          _
        // Predicated region
        $region21: #{tpu_custom_call.1} parent=11 // pred_check
          %p149 = pneg %p102
        $region22: #{tpu_custom_call.1} parent=11 // pred_check_branch
          %151 = sbr.rel (%p149) target = $region24
        $region23: #{tpu_custom_call.1} parent=11 // pred_region
          _
        $region24: #{tpu_custom_call.1} parent=11 // pred_fallthru
          _
      $region12: #{tpu_custom_call.1} parent=5 // pred_fallthru
        _
      %p152 = scmp.lt.s32.totalorder %s13, 2
      // Predicated region
      $region25: #{tpu_custom_call.1} parent=5 // pred_check
        %p153 = pneg %p152
      $region26: #{tpu_custom_call.1} parent=5 // pred_check_branch
        %155 = sbr.rel (%p153) target = $region28
      $region27: #{tpu_custom_call.1} parent=5 // pred_region
        // Predicated region
        $region29: #{tpu_custom_call.1} parent=27 // pred_check
          %p156 = pneg %p33
        $region30: #{tpu_custom_call.1} parent=27 // pred_check_branch
          %158 = sbr.rel (%p156) target = $region32
        $region31: #{tpu_custom_call.1} parent=27 // pred_region
          %p159 = scmp.lt.s32.totalorder %s13, 1
          %s160 = scalar_select %p159, %s13, 1
          %s161 = smul.addr %s160, 8
          %s162 = smul.addr %s161, 8
          %s163 = scalar_lea.vmem %s0, %s162
        $region32: #{tpu_custom_call.1} parent=27 // pred_fallthru
          _
      $region28: #{tpu_custom_call.1} parent=5 // pred_fallthru
        _
      %p164 = scmp.le.s32.totalorder 1, %s13
      %p165 = scmp.lt.s32.totalorder %s13, 3
      %p166 = pnand %p164, %p165
      %p167 = pneg %p166
      // Predicated region
      $region33: #{tpu_custom_call.1} parent=5 // pred_check
        _
      $region34: #{tpu_custom_call.1} parent=5 // pred_check_branch
        %169 = sbr.rel (%p166) target = $region36
      $region35: #{tpu_custom_call.1} parent=5 // pred_region
        %s170 = ssub.s32 %s13, 1
        %p171 = scmp.lt.s32.totalorder %s18, 1
        %s172 = scalar_select %p171, %s18, 1
        %s173 = smul.addr %s172, 8
        %s174 = smul.addr %s173, 8
        %s175 = scalar_lea.vmem %s0, %s174
        %p176 = pneg %p39
        %p177 = pneg %p36
        %p178 = pneg %p60
        %p179 = pneg %p57
        %p180 = pneg %p81
        %p181 = pneg %p78
        %p182 = pneg %p102
        %p183 = pneg %p99
        %p184 = pneg %p128
        %p185 = pneg %p125
        %s186 = sand.u32 %s115, 1
        %s187 = scalar_lea.sflag [#allocation5], %s186
        %s188 = sand.u32 %s115, 1
        %s189 = smul.addr %s188, 64
        %s190 = scalar_lea.vmem [#allocation4], %s189
        %p191 = scmp.lt.s32.totalorder %s18, 1
        %s192 = scalar_select %p191, %s18, 1
        %s193 = smul.addr %s192, 8
        %s194 = smul.addr %s193, 8
        %s195 = scalar_lea.vmem %s0, %s194
        %v196 = vld [vmem:[%s195] sm:$0xff]
        %v197 = vld [vmem:[%s195 + $0x8] sm:$0xff]
        %v198 = vld [vmem:[%s195 + $0x10] sm:$0xff]
        %v199 = vld [vmem:[%s195 + $0x18] sm:$0xff]
        %v200 = vld [vmem:[%s195 + $0x20] sm:$0xff]
        %v201 = vld [vmem:[%s195 + $0x28] sm:$0xff]
        %v202 = vld [vmem:[%s195 + $0x30] sm:$0xff]
        %v203 = vld [vmem:[%s195 + $0x38] sm:$0xff]
        %v204 = vadd.f32 %v196, %v197
        %205 = vadd.xlane.f32.xlu0 %v204
        %v206 = vpop.xlane.xlu0 %205
        %v207 = vadd.f32 %v198, %v199
        %208 = vadd.xlane.f32.xlu0 %v207
        %v209 = vpop.xlane.xlu0 %208
        %v210 = vadd.f32 %v200, %v201
        %211 = vadd.xlane.f32.xlu0 %v210
        %v212 = vpop.xlane.xlu0 %211
        %v213 = vadd.f32 %v202, %v203
        %214 = vadd.xlane.f32.xlu0 %v213
        %v215 = vpop.xlane.xlu0 %214
        %v216 = vrcp.pop 256.0
        %v217 = vmul.f32 %v206, %v216
        %v218 = vmul.f32 %v209, %v216
        %v219 = vmul.f32 %v212, %v216
        %v220 = vmul.f32 %v215, %v216
        %v221 = vmax.f32 %v196, %v197
        %222 = vmax.xlane.f32.xlu0 %v221
        %v223 = vpop.xlane.xlu0 %222
        %v224 = vmax.f32 %v198, %v199
        %225 = vmax.xlane.f32.xlu0 %v224
        %v226 = vpop.xlane.xlu0 %225
        %v227 = vmax.f32 %v200, %v201
        %228 = vmax.xlane.f32.xlu0 %v227
        %v229 = vpop.xlane.xlu0 %228
        %v230 = vmax.f32 %v202, %v203
        %231 = vmax.xlane.f32.xlu0 %v230
        %v232 = vpop.xlane.xlu0 %231
        %v233 = vlaneseq
        %v234 = vand.u32 %v233, 127
        %vm235 = vcmp.eq.s32.totalorder %v234, 0
        %v236 = vsel %vm235, %v217, %v223
        %v237 = vsel %vm235, %v218, %v226
        %v238 = vsel %vm235, %v219, %v229
        %v239 = vsel %vm235, %v220, %v232
        %v240 = vld [vmem:[%s1] sm:$0x3]
        %vm241 = vcmask 261120
        %v243 = vsel %vm241, %v240, 0
        %245 = vmatprep.subr.mxu0 0.0
        %246 = vmatpush1.msra.mxu0 0.0
        %247 = vmatprep.subr.mxu0 0.0
        %248 = vmatpush1.msra.mxu0 0.0
        %249 = vmatprep.subr.mxu0 0.0
        %250 = vmatpush1.msra.mxu0 0.0
        %251 = vmatprep.subr.mxu0 0.0
        %252 = vmatpush1.msra.mxu0 0.0
        %253 = vmatprep.subr.mxu0 0.0
        %254 = vmatpush1.msra.mxu0 0.0
        %255 = vmatprep.subr.mxu0 0.0
        %256 = vmatpush1.msra.mxu0 0.0
        %257 = vmatprep.subr.mxu0 0.0
        %258 = vmatpush1.msra.mxu0 0.0
        %259 = vmatprep.subr.mxu0 0.0
        %260 = vmatpush1.msra.mxu0 0.0
        %261 = vmatprep.subr.mxu0 0.0
        %262 = vmatpush1.msra.mxu0 0.0
        %263 = vmatprep.subr.mxu0 0.0
        %264 = vmatpush1.msra.mxu0 0.0
        %265 = vmatprep.subr.mxu0 0.0
        %266 = vmatpush1.msra.mxu0 0.0
        %267 = vmatprep.subr.mxu0 0.0
        %268 = vmatpush1.msra.mxu0 0.0
        %269 = vmatprep.subr.mxu0 0.0
        %270 = vmatpush1.msra.mxu0 %v239
        %271 = vmatprep.subr.mxu0 0.0
        %272 = vmatpush1.msra.mxu0 %v238
        %273 = vmatprep.subr.mxu0 0.0
        %274 = vmatpush1.msra.mxu0 %v237
        %275 = vmatprep.subr.mxu0 0.0
        %276 = vmatpush1.msra.mxu0 %v236
        %277 = vmatprep.subr.mxu0 0.0
        %278 = vmatpush2.msra.mxu0 0.0
        %279 = vmatprep.subr.mxu0 0.0
        %280 = vmatpush2.msra.mxu0 0.0
        %281 = vmatprep.subr.mxu0 0.0
        %282 = vmatpush2.msra.mxu0 0.0
        %283 = vmatprep.subr.mxu0 0.0
        %284 = vmatpush2.msra.mxu0 0.0
        %285 = vmatprep.subr.mxu0 0.0
        %286 = vmatpush2.msra.mxu0 0.0
        %287 = vmatprep.subr.mxu0 0.0
        %288 = vmatpush2.msra.mxu0 0.0
        %289 = vmatprep.subr.mxu0 0.0
        %290 = vmatpush2.msra.mxu0 0.0
        %291 = vmatprep.subr.mxu0 0.0
        %292 = vmatpush2.msra.mxu0 0.0
        %293 = vmatprep.subr.mxu0 0.0
        %294 = vmatpush2.msra.mxu0 0.0
        %295 = vmatprep.subr.mxu0 0.0
        %296 = vmatpush2.msra.mxu0 0.0
        %297 = vmatprep.subr.mxu0 0.0
        %298 = vmatpush2.msra.mxu0 0.0
        %299 = vmatprep.subr.mxu0 0.0
        %300 = vmatpush2.msra.mxu0 0.0
        %301 = vmatprep.subr.mxu0 0.0
        %302 = vmatpush2.msra.mxu0 0.0
        %303 = vmatprep.subr.mxu0 0.0
        %304 = vmatpush2.msra.mxu0 0.0
        %305 = vmatprep.subr.mxu0 0.0
        %306 = vmatpush2.msra.mxu0 0.0
        %307 = vmatprep.subr.mxu0 0.0
        %308 = vmatpush2.msra.mxu0 0.0
        %309 = vmatprep.mubr.f32.mxu0 0.0
        %310 = vmatmul.mubr.f32.gmra.mxu0 %v243
        %v311 = vpop.f32.mrf.mxu0
        %v312 = vadd.f32 0.0, %v311
        %v313 = vpop.f32.mrf.mxu0
        %314 = vdwg.mxu0
        %v315 = vmax.f32 %v312, 0.0
        %v316 = vld [vmem:[%s2] sm:$0xff]
        %v317 = vld [vmem:[%s2 + $0x8] sm:$0xff]
        %v318 = vld [vmem:[%s2 + $0x10] sm:$0xff]
        %v319 = vld [vmem:[%s2 + $0x18] sm:$0xff]
        %vm320 = vcmask 15360
        %v322 = vsel %vm320, %v316, 0
        %v325 = vsel %vm320, %v317, 0
        %v328 = vsel %vm320, %v318, 0
        %v331 = vsel %vm320, %v319, 0
        %vm333 = vcmask 1041408
        %v335 = vsel %vm333, %v315, 0
        %337 = vmatprep.subr.mxu0 0.0
        %338 = vmatpush1.msra.mxu0 0.0
        %339 = vmatprep.subr.mxu0 0.0
        %340 = vmatpush1.msra.mxu0 0.0
        %341 = vmatprep.subr.mxu0 0.0
        %342 = vmatpush1.msra.mxu0 0.0
        %343 = vmatprep.subr.mxu0 0.0
        %344 = vmatpush1.msra.mxu0 0.0
        %345 = vmatprep.subr.mxu0 0.0
        %346 = vmatpush1.msra.mxu0 0.0
        %347 = vmatprep.subr.mxu0 0.0
        %348 = vmatpush1.msra.mxu0 0.0
        %349 = vmatprep.subr.mxu0 0.0
        %350 = vmatpush1.msra.mxu0 0.0
        %351 = vmatprep.subr.mxu0 0.0
        %352 = vmatpush1.msra.mxu0 0.0
        %353 = vmatprep.subr.mxu0 0.0
        %354 = vmatpush1.msra.mxu0 0.0
        %355 = vmatprep.subr.mxu0 0.0
        %356 = vmatpush1.msra.mxu0 0.0
        %357 = vmatprep.subr.mxu0 0.0
        %358 = vmatpush1.msra.mxu0 0.0
        %359 = vmatprep.subr.mxu0 0.0
        %360 = vmatpush1.msra.mxu0 0.0
        %361 = vmatprep.subr.mxu0 0.0
        %362 = vmatpush1.msra.mxu0 0.0
        %363 = vmatprep.subr.mxu0 0.0
        %364 = vmatpush1.msra.mxu0 0.0
        %365 = vmatprep.subr.mxu0 0.0
        %366 = vmatpush1.msra.mxu0 0.0
        %367 = vmatprep.subr.mxu0 0.0
        %368 = vmatpush1.msra.mxu0 %v335
        %369 = vmatprep.subr.mxu0 0.0
        %370 = vmatpush2.msra.mxu0 0.0
        %371 = vmatprep.subr.mxu0 0.0
        %372 = vmatpush2.msra.mxu0 0.0
        %373 = vmatprep.subr.mxu0 0.0
        %374 = vmatpush2.msra.mxu0 0.0
        %375 = vmatprep.subr.mxu0 0.0
        %376 = vmatpush2.msra.mxu0 0.0
        %377 = vmatprep.subr.mxu0 0.0
        %378 = vmatpush2.msra.mxu0 0.0
        %379 = vmatprep.subr.mxu0 0.0
        %380 = vmatpush2.msra.mxu0 0.0
        %381 = vmatprep.subr.mxu0 0.0
        %382 = vmatpush2.msra.mxu0 0.0
        %383 = vmatprep.subr.mxu0 0.0
        %384 = vmatpush2.msra.mxu0 0.0
        %385 = vmatprep.subr.mxu0 0.0
        %386 = vmatpush2.msra.mxu0 0.0
        %387 = vmatprep.subr.mxu0 0.0
        %388 = vmatpush2.msra.mxu0 0.0
        %389 = vmatprep.subr.mxu0 0.0
        %390 = vmatpush2.msra.mxu0 0.0
        %391 = vmatprep.subr.mxu0 0.0
        %392 = vmatpush2.msra.mxu0 0.0
        %393 = vmatprep.subr.mxu0 0.0
        %394 = vmatpush2.msra.mxu0 0.0
        %395 = vmatprep.subr.mxu0 0.0
        %396 = vmatpush2.msra.mxu0 0.0
        %397 = vmatprep.subr.mxu0 0.0
        %398 = vmatpush2.msra.mxu0 0.0
        %399 = vmatprep.subr.mxu0 0.0
        %400 = vmatpush2.msra.mxu0 0.0
        %401 = vmatprep.mubr.f32.mxu0 0.0
        %402 = vmatmul.mubr.f32.gmra.mxu0 %v322
        %v403 = vpop.f32.mrf.mxu0
        %v404 = vadd.f32 0.0, %v403
        %v405 = vpop.f32.mrf.mxu0
        %406 = vmatprep.mubr.f32.mxu0 0.0
        %407 = vmatmul.mubr.f32.gmra.mxu0 %v325
        %v408 = vpop.f32.mrf.mxu0
        %v409 = vadd.f32 0.0, %v408
        %v410 = vpop.f32.mrf.mxu0
        %411 = vmatprep.mubr.f32.mxu0 0.0
        %412 = vmatmul.mubr.f32.gmra.mxu0 %v328
        %v413 = vpop.f32.mrf.mxu0
        %v414 = vadd.f32 0.0, %v413
        %v415 = vpop.f32.mrf.mxu0
        %416 = vmatprep.mubr.f32.mxu0 0.0
        %417 = vmatmul.mubr.f32.gmra.mxu0 %v331
        %v418 = vpop.f32.mrf.mxu0
        %v419 = vadd.f32 0.0, %v418
        %v420 = vpop.f32.mrf.mxu0
        %421 = vdwg.mxu0
        %426 = vrot.lane.b32.xlu0 %v404, 127
        %v427 = vpop.permute.xlu0 %426
        %428 = vrot.lane.b32.xlu0 %v409, 127
        %v429 = vpop.permute.xlu0 %428
        %430 = vrot.lane.b32.xlu0 %v414, 127
        %v431 = vpop.permute.xlu0 %430
        %432 = vrot.lane.b32.xlu0 %v419, 127
        %v433 = vpop.permute.xlu0 %432
        %v438 = vadd.f32 %v404, %v427
        %v439 = vadd.f32 %v409, %v429
        %v440 = vadd.f32 %v414, %v431
        %v441 = vadd.f32 %v419, %v433
        %v442 = vxor.u32 %v438, 2147483648
        %v443 = vxor.u32 %v439, 2147483648
        %v444 = vxor.u32 %v440, 2147483648
        %v445 = vxor.u32 %v441, 2147483648
        %v446 = vmul.f32 %v442, 1.442695
        %v447 = vpow.pop %v446
        %v448 = vmul.f32 %v443, 1.442695
        %v449 = vpow.pop %v448
        %v450 = vmul.f32 %v444, 1.442695
        %v451 = vpow.pop %v450
        %v452 = vmul.f32 %v445, 1.442695
        %v453 = vpow.pop %v452
        %v454 = vadd.f32 %v447, 1.0
        %v455 = vadd.f32 %v449, 1.0
        %v456 = vadd.f32 %v451, 1.0
        %v457 = vadd.f32 %v453, 1.0
        %v458 = vrcp.pop %v454
        %v459 = vmul.f32 1.0, %v458
        %v460 = vrcp.pop %v455
        %v461 = vmul.f32 1.0, %v460
        %v462 = vrcp.pop %v456
        %v463 = vmul.f32 1.0, %v462
        %v464 = vrcp.pop %v457
        %v465 = vmul.f32 1.0, %v464
        %467 = vset.pattern.permute.xlu0 0
        %468 = vperm.xlu0 %467, %v459
        %v469 = vpop.permute.xlu0 %468
        %472 = vset.pattern.permute.xlu0 0
        %473 = vperm.xlu0 %472, %v461
        %v474 = vpop.permute.xlu0 %473
        %477 = vset.pattern.permute.xlu0 0
        %478 = vperm.xlu0 %477, %v463
        %v479 = vpop.permute.xlu0 %478
        %482 = vset.pattern.permute.xlu0 0
        %483 = vperm.xlu0 %482, %v465
        %v484 = vpop.permute.xlu0 %483
        %v486 = vmul.f32 %v196, %v469
        %v487 = vmul.f32 %v197, %v469
        %v488 = vmul.f32 %v198, %v474
        %v489 = vmul.f32 %v199, %v474
        %v490 = vmul.f32 %v200, %v479
        %v491 = vmul.f32 %v201, %v479
        %v492 = vmul.f32 %v202, %v484
        %v493 = vmul.f32 %v203, %v484
        %v494 = vadd.f32 %v486, %v488
        %v495 = vadd.f32 %v494, %v490
        %v496 = vadd.f32 %v495, %v492
        %v497 = vrot.slane %v496, 4
        %v498 = vadd.f32 %v496, %v497
        %v499 = vrot.slane %v498, 2
        %v500 = vadd.f32 %v498, %v499
        %v501 = vrot.slane %v500, 1
        %v502 = vadd.f32 %v500, %v501
        %v503 = vadd.f32 %v487, %v489
        %v504 = vadd.f32 %v503, %v491
        %v505 = vadd.f32 %v504, %v493
        %v506 = vrot.slane %v505, 4
        %v507 = vadd.f32 %v505, %v506
        %v508 = vrot.slane %v507, 2
        %v509 = vadd.f32 %v507, %v508
        %v510 = vrot.slane %v509, 1
        %v511 = vadd.f32 %v509, %v510
        %v512 = vrcp.pop 32.0
        %v513 = vmul.f32 %v502, %v512
        %v514 = vmul.f32 %v511, %v512
        %v515 = vmax.f32 %v486, %v490
        %v516 = vmax.f32 %v488, %v492
        %v517 = vmax.f32 %v515, %v516
        %v518 = vrot.slane %v517, 4
        %v519 = vmax.f32 %v517, %v518
        %v520 = vrot.slane %v519, 2
        %v521 = vmax.f32 %v519, %v520
        %v522 = vrot.slane %v521, 1
        %v523 = vmax.f32 %v521, %v522
        %v524 = vmax.f32 %v487, %v491
        %v525 = vmax.f32 %v489, %v493
        %v526 = vmax.f32 %v524, %v525
        %v527 = vrot.slane %v526, 4
        %v528 = vmax.f32 %v526, %v527
        %v529 = vrot.slane %v528, 2
        %v530 = vmax.f32 %v528, %v529
        %v531 = vrot.slane %v530, 1
        %v532 = vmax.f32 %v530, %v531
        %vm533 = vcmask 179200
        %534 = vst.msk [vmem:[#allocation2] sm:$0xff] %vm533, 0.0
        %535 = vst.msk [vmem:[#allocation2 + $0x8] sm:$0xff] %vm533, 0.0
        %vm536 = vcmask 177152
        %537 = vst.msk [vmem:[#allocation2 + $0x10] sm:$0x3f] %vm536, 0.0
        %538 = vst.msk [vmem:[#allocation2 + $0x18] sm:$0xff] %vm533, 0.0
        %539 = vst.msk [vmem:[#allocation2 + $0x20] sm:$0xff] %vm533, 0.0
        %540 = vst.msk [vmem:[#allocation2 + $0x28] sm:$0x3f] %vm536, 0.0
        %542 = vrot.lane.b32.xlu0 %v513, 3
        %v543 = vpop.permute.xlu0 %542
        %vm545 = vcmask 147480
        %546 = vst.msk [vmem:[#allocation2 + $0x3] sm:$0x1] %vm545, %v543
        %548 = vrot.lane.b32.xlu0 %v523, 3
        %v549 = vpop.permute.xlu0 %548
        %s551 = scalar_lea.vmem [#allocation2], 24
        %552 = vst.msk [vmem:[%s551 + $0x3] sm:$0x1] %vm545, %v549
        %553 = vrot.lane.b32.xlu0 %v513, 115
        %v554 = vpop.permute.xlu0 %553
        %556 = vst.msk [vmem:[#allocation2 + $0x4] sm:$0x1] %vm545, %v554
        %557 = vrot.lane.b32.xlu0 %v523, 115
        %v558 = vpop.permute.xlu0 %557
        %560 = vst.msk [vmem:[%s551 + $0x4] sm:$0x1] %vm545, %v558
        %561 = vrot.lane.b32.xlu0 %v513, 99
        %v562 = vpop.permute.xlu0 %561
        %564 = vst.msk [vmem:[#allocation2 + $0x5] sm:$0x1] %vm545, %v562
        %565 = vrot.lane.b32.xlu0 %v523, 99
        %v566 = vpop.permute.xlu0 %565
        %568 = vst.msk [vmem:[%s551 + $0x5] sm:$0x1] %vm545, %v566
        %569 = vrot.lane.b32.xlu0 %v513, 83
        %v570 = vpop.permute.xlu0 %569
        %572 = vst.msk [vmem:[#allocation2 + $0x6] sm:$0x1] %vm545, %v570
        %573 = vrot.lane.b32.xlu0 %v523, 83
        %v574 = vpop.permute.xlu0 %573
        %576 = vst.msk [vmem:[%s551 + $0x6] sm:$0x1] %vm545, %v574
        %577 = vrot.lane.b32.xlu0 %v513, 67
        %v578 = vpop.permute.xlu0 %577
        %580 = vst.msk [vmem:[#allocation2 + $0x7] sm:$0x1] %vm545, %v578
        %581 = vrot.lane.b32.xlu0 %v523, 67
        %v582 = vpop.permute.xlu0 %581
        %584 = vst.msk [vmem:[%s551 + $0x7] sm:$0x1] %vm545, %v582
        %585 = vrot.lane.b32.xlu0 %v513, 51
        %v586 = vpop.permute.xlu0 %585
        %588 = vst.msk [vmem:[#allocation2 + $0x8] sm:$0x1] %vm545, %v586
        %589 = vrot.lane.b32.xlu0 %v523, 51
        %v590 = vpop.permute.xlu0 %589
        %592 = vst.msk [vmem:[%s551 + $0x8] sm:$0x1] %vm545, %v590
        %593 = vrot.lane.b32.xlu0 %v513, 35
        %v594 = vpop.permute.xlu0 %593
        %596 = vst.msk [vmem:[#allocation2 + $0x9] sm:$0x1] %vm545, %v594
        %597 = vrot.lane.b32.xlu0 %v523, 35
        %v598 = vpop.permute.xlu0 %597
        %600 = vst.msk [vmem:[%s551 + $0x9] sm:$0x1] %vm545, %v598
        %601 = vrot.lane.b32.xlu0 %v513, 19
        %v602 = vpop.permute.xlu0 %601
        %604 = vst.msk [vmem:[#allocation2 + $0xa] sm:$0x1] %vm545, %v602
        %605 = vrot.lane.b32.xlu0 %v523, 19
        %v606 = vpop.permute.xlu0 %605
        %608 = vst.msk [vmem:[%s551 + $0xa] sm:$0x1] %vm545, %v606
        %610 = vrot.lane.b32.xlu0 %v514, 3
        %v611 = vpop.permute.xlu0 %610
        %613 = vst.msk [vmem:[#allocation2 + $0xb] sm:$0x1] %vm545, %v611
        %615 = vrot.lane.b32.xlu0 %v532, 3
        %v616 = vpop.permute.xlu0 %615
        %618 = vst.msk [vmem:[%s551 + $0xb] sm:$0x1] %vm545, %v616
        %619 = vrot.lane.b32.xlu0 %v514, 115
        %v620 = vpop.permute.xlu0 %619
        %622 = vst.msk [vmem:[#allocation2 + $0xc] sm:$0x1] %vm545, %v620
        %623 = vrot.lane.b32.xlu0 %v532, 115
        %v624 = vpop.permute.xlu0 %623
        %626 = vst.msk [vmem:[%s551 + $0xc] sm:$0x1] %vm545, %v624
        %627 = vrot.lane.b32.xlu0 %v514, 99
        %v628 = vpop.permute.xlu0 %627
        %630 = vst.msk [vmem:[#allocation2 + $0xd] sm:$0x1] %vm545, %v628
        %631 = vrot.lane.b32.xlu0 %v532, 99
        %v632 = vpop.permute.xlu0 %631
        %634 = vst.msk [vmem:[%s551 + $0xd] sm:$0x1] %vm545, %v632
        %635 = vrot.lane.b32.xlu0 %v514, 83
        %v636 = vpop.permute.xlu0 %635
        %638 = vst.msk [vmem:[#allocation2 + $0xe] sm:$0x1] %vm545, %v636
        %639 = vrot.lane.b32.xlu0 %v532, 83
        %v640 = vpop.permute.xlu0 %639
        %642 = vst.msk [vmem:[%s551 + $0xe] sm:$0x1] %vm545, %v640
        %643 = vrot.lane.b32.xlu0 %v514, 67
        %v644 = vpop.permute.xlu0 %643
        %646 = vst.msk [vmem:[#allocation2 + $0xf] sm:$0x1] %vm545, %v644
        %647 = vrot.lane.b32.xlu0 %v532, 67
        %v648 = vpop.permute.xlu0 %647
        %650 = vst.msk [vmem:[%s551 + $0xf] sm:$0x1] %vm545, %v648
        %651 = vrot.lane.b32.xlu0 %v514, 51
        %v652 = vpop.permute.xlu0 %651
        %654 = vst.msk [vmem:[#allocation2 + $0x10] sm:$0x1] %vm545, %v652
        %655 = vrot.lane.b32.xlu0 %v532, 51
        %v656 = vpop.permute.xlu0 %655
        %658 = vst.msk [vmem:[%s551 + $0x10] sm:$0x1] %vm545, %v656
        %659 = vrot.lane.b32.xlu0 %v514, 35
        %v660 = vpop.permute.xlu0 %659
        %662 = vst.msk [vmem:[#allocation2 + $0x11] sm:$0x1] %vm545, %v660
        %663 = vrot.lane.b32.xlu0 %v532, 35
        %v664 = vpop.permute.xlu0 %663
        %666 = vst.msk [vmem:[%s551 + $0x11] sm:$0x1] %vm545, %v664
        %667 = vrot.lane.b32.xlu0 %v514, 19
        %v668 = vpop.permute.xlu0 %667
        %670 = vst.msk [vmem:[#allocation2 + $0x12] sm:$0x1] %vm545, %v668
        %671 = vrot.lane.b32.xlu0 %v532, 19
        %v672 = vpop.permute.xlu0 %671
        %674 = vst.msk [vmem:[%s551 + $0x12] sm:$0x1] %vm545, %v672
        %v675 = vld [vmem:[%s3] sm:$0xff]
        %v676 = vld [vmem:[%s3 + $0x8] sm:$0xff]
        %v677 = vld [vmem:[%s3 + $0x10] sm:$0x3f]
        %v678 = vld [vmem:[%s3 + $0x18] sm:$0xff]
        %v679 = vld [vmem:[%s3 + $0x20] sm:$0xff]
        %v680 = vld [vmem:[%s3 + $0x28] sm:$0x3f]
        %v681 = vld [vmem:[%s3 + $0x30] sm:$0xff]
        %v682 = vld [vmem:[%s3 + $0x38] sm:$0xff]
        %v683 = vld [vmem:[%s3 + $0x40] sm:$0x3f]
        %v684 = vld [vmem:[%s3 + $0x48] sm:$0xff]
        %v685 = vld [vmem:[%s3 + $0x50] sm:$0xff]
        %v686 = vld [vmem:[%s3 + $0x58] sm:$0x3f]
        %v687 = vld [vmem:[%s3 + $0x60] sm:$0xff]
        %v688 = vld [vmem:[%s3 + $0x68] sm:$0xff]
        %v689 = vld [vmem:[%s3 + $0x70] sm:$0x3f]
        %v690 = vld [vmem:[%s3 + $0x78] sm:$0xff]
        %v691 = vld [vmem:[%s3 + $0x80] sm:$0xff]
        %v692 = vld [vmem:[%s3 + $0x88] sm:$0x3f]
        %v693 = vld [vmem:[%s3 + $0x90] sm:$0xff]
        %v694 = vld [vmem:[%s3 + $0x98] sm:$0xff]
        %v695 = vld [vmem:[%s3 + $0xa0] sm:$0x3f]
        %v696 = vld [vmem:[%s3 + $0xa8] sm:$0xff]
        %v697 = vld [vmem:[%s3 + $0xb0] sm:$0xff]
        %v698 = vld [vmem:[%s3 + $0xb8] sm:$0x3f]
        %v699 = vld [vmem:[%s3 + $0xc0] sm:$0xff]
        %v700 = vld [vmem:[%s3 + $0xc8] sm:$0xff]
        %v701 = vld [vmem:[%s3 + $0xd0] sm:$0x3f]
        %v702 = vld [vmem:[%s3 + $0xd8] sm:$0xff]
        %v703 = vld [vmem:[%s3 + $0xe0] sm:$0xff]
        %v704 = vld [vmem:[%s3 + $0xe8] sm:$0x3f]
        %v705 = vld [vmem:[%s3 + $0xf0] sm:$0xff]
        %v706 = vld [vmem:[%s3 + $0xf8] sm:$0xff]
        %v707 = vld [vmem:[%s3 + $0x100] sm:$0x3f]
        %v708 = vld [vmem:[%s3 + $0x108] sm:$0xff]
        %v709 = vld [vmem:[%s3 + $0x110] sm:$0xff]
        %v710 = vld [vmem:[%s3 + $0x118] sm:$0x3f]
        %v711 = vld [vmem:[%s3 + $0x120] sm:$0xff]
        %v712 = vld [vmem:[%s3 + $0x128] sm:$0xff]
        %v713 = vld [vmem:[%s3 + $0x130] sm:$0x3f]
        %v714 = vld [vmem:[%s3 + $0x138] sm:$0xff]
        %v715 = vld [vmem:[%s3 + $0x140] sm:$0xff]
        %v716 = vld [vmem:[%s3 + $0x148] sm:$0x3f]
        %v717 = vld [vmem:[#allocation2] sm:$0xff]
        %v718 = vld [vmem:[#allocation2 + $0x8] sm:$0xff]
        %v719 = vld [vmem:[#allocation2 + $0x1] sm:$0xff]
        %v720 = vld [vmem:[#allocation2 + $0x9] sm:$0xff]
        %v722 = vsel %vm533, %v719, 0
        %v725 = vsel %vm533, %v720, 0
        %vm727 = vcmask 1045504
        %v729 = vsel %vm727, %v680, 0
        %731 = vmatprep.subr.mxu0 0.0
        %732 = vmatpush1.msra.mxu0 0.0
        %733 = vmatprep.subr.mxu0 0.0
        %734 = vmatpush1.msra.mxu0 0.0
        %735 = vmatprep.subr.mxu0 0.0
        %736 = vmatpush1.msra.mxu0 0.0
        %737 = vmatprep.subr.mxu0 0.0
        %738 = vmatpush1.msra.mxu0 0.0
        %739 = vmatprep.subr.mxu0 0.0
        %740 = vmatpush1.msra.mxu0 0.0
        %741 = vmatprep.subr.mxu0 0.0
        %742 = vmatpush1.msra.mxu0 0.0
        %743 = vmatprep.subr.mxu0 0.0
        %744 = vmatpush1.msra.mxu0 0.0
        %745 = vmatprep.subr.mxu0 0.0
        %746 = vmatpush1.msra.mxu0 0.0
        %747 = vmatprep.subr.mxu0 0.0
        %748 = vmatpush1.msra.mxu0 0.0
        %749 = vmatprep.subr.mxu0 0.0
        %750 = vmatpush1.msra.mxu0 0.0
        %751 = vmatprep.subr.mxu0 0.0
        %752 = vmatpush1.msra.mxu0 0.0
        %753 = vmatprep.subr.mxu0 0.0
        %754 = vmatpush1.msra.mxu0 0.0
        %755 = vmatprep.subr.mxu0 0.0
        %756 = vmatpush1.msra.mxu0 0.0
        %757 = vmatprep.subr.mxu0 0.0
        %758 = vmatpush1.msra.mxu0 %v729
        %759 = vmatprep.subr.mxu0 0.0
        %760 = vmatpush1.msra.mxu0 %v679
        %761 = vmatprep.subr.mxu0 0.0
        %762 = vmatpush1.msra.mxu0 %v678
        %763 = vmatprep.subr.mxu0 0.0
        %764 = vmatpush2.msra.mxu0 0.0
        %765 = vmatprep.subr.mxu0 0.0
        %766 = vmatpush2.msra.mxu0 0.0
        %767 = vmatprep.subr.mxu0 0.0
        %768 = vmatpush2.msra.mxu0 0.0
        %769 = vmatprep.subr.mxu0 0.0
        %770 = vmatpush2.msra.mxu0 0.0
        %771 = vmatprep.subr.mxu0 0.0
        %772 = vmatpush2.msra.mxu0 0.0
        %773 = vmatprep.subr.mxu0 0.0
        %774 = vmatpush2.msra.mxu0 0.0
        %775 = vmatprep.subr.mxu0 0.0
        %776 = vmatpush2.msra.mxu0 0.0
        %777 = vmatprep.subr.mxu0 0.0
        %778 = vmatpush2.msra.mxu0 0.0
        %779 = vmatprep.subr.mxu0 0.0
        %780 = vmatpush2.msra.mxu0 0.0
        %781 = vmatprep.subr.mxu0 0.0
        %782 = vmatpush2.msra.mxu0 0.0
        %783 = vmatprep.subr.mxu0 0.0
        %784 = vmatpush2.msra.mxu0 0.0
        %785 = vmatprep.subr.mxu0 0.0
        %786 = vmatpush2.msra.mxu0 0.0
        %787 = vmatprep.subr.mxu0 0.0
        %788 = vmatpush2.msra.mxu0 0.0
        %789 = vmatprep.subr.mxu0 0.0
        %790 = vmatpush2.msra.mxu0 0.0
        %791 = vmatprep.subr.mxu0 0.0
        %792 = vmatpush2.msra.mxu0 0.0
        %793 = vmatprep.subr.mxu0 0.0
        %794 = vmatpush2.msra.mxu0 0.0
        %795 = vmatprep.mubr.f32.mxu0 0.0
        %796 = vmatmul.mubr.f32.gmra.mxu0 %v722
        %v797 = vpop.f32.mrf.mxu0
        %v798 = vadd.f32 0.0, %v797
        %v799 = vpop.f32.mrf.mxu0
        %800 = vmatprep.mubr.f32.mxu0 0.0
        %801 = vmatmul.mubr.f32.gmra.mxu0 %v725
        %v802 = vpop.f32.mrf.mxu0
        %v803 = vadd.f32 0.0, %v802
        %v804 = vpop.f32.mrf.mxu0
        %805 = vdwg.mxu0
        %v807 = vsel %vm533, %v717, 0
        %v810 = vsel %vm533, %v718, 0
        %v813 = vsel %vm727, %v677, 0
        %815 = vmatprep.subr.mxu0 0.0
        %816 = vmatpush1.msra.mxu0 0.0
        %817 = vmatprep.subr.mxu0 0.0
        %818 = vmatpush1.msra.mxu0 0.0
        %819 = vmatprep.subr.mxu0 0.0
        %820 = vmatpush1.msra.mxu0 0.0
        %821 = vmatprep.subr.mxu0 0.0
        %822 = vmatpush1.msra.mxu0 0.0
        %823 = vmatprep.subr.mxu0 0.0
        %824 = vmatpush1.msra.mxu0 0.0
        %825 = vmatprep.subr.mxu0 0.0
        %826 = vmatpush1.msra.mxu0 0.0
        %827 = vmatprep.subr.mxu0 0.0
        %828 = vmatpush1.msra.mxu0 0.0
        %829 = vmatprep.subr.mxu0 0.0
        %830 = vmatpush1.msra.mxu0 0.0
        %831 = vmatprep.subr.mxu0 0.0
        %832 = vmatpush1.msra.mxu0 0.0
        %833 = vmatprep.subr.mxu0 0.0
        %834 = vmatpush1.msra.mxu0 0.0
        %835 = vmatprep.subr.mxu0 0.0
        %836 = vmatpush1.msra.mxu0 0.0
        %837 = vmatprep.subr.mxu0 0.0
        %838 = vmatpush1.msra.mxu0 0.0
        %839 = vmatprep.subr.mxu0 0.0
        %840 = vmatpush1.msra.mxu0 0.0
        %841 = vmatprep.subr.mxu0 0.0
        %842 = vmatpush1.msra.mxu0 %v813
        %843 = vmatprep.subr.mxu0 0.0
        %844 = vmatpush1.msra.mxu0 %v676
        %845 = vmatprep.subr.mxu0 0.0
        %846 = vmatpush1.msra.mxu0 %v675
        %847 = vmatprep.subr.mxu0 0.0
        %848 = vmatpush2.msra.mxu0 0.0
        %849 = vmatprep.subr.mxu0 0.0
        %850 = vmatpush2.msra.mxu0 0.0
        %851 = vmatprep.subr.mxu0 0.0
        %852 = vmatpush2.msra.mxu0 0.0
        %853 = vmatprep.subr.mxu0 0.0
        %854 = vmatpush2.msra.mxu0 0.0
        %855 = vmatprep.subr.mxu0 0.0
        %856 = vmatpush2.msra.mxu0 0.0
        %857 = vmatprep.subr.mxu0 0.0
        %858 = vmatpush2.msra.mxu0 0.0
        %859 = vmatprep.subr.mxu0 0.0
        %860 = vmatpush2.msra.mxu0 0.0
        %861 = vmatprep.subr.mxu0 0.0
        %862 = vmatpush2.msra.mxu0 0.0
        %863 = vmatprep.subr.mxu0 0.0
        %864 = vmatpush2.msra.mxu0 0.0
        %865 = vmatprep.subr.mxu0 0.0
        %866 = vmatpush2.msra.mxu0 0.0
        %867 = vmatprep.subr.mxu0 0.0
        %868 = vmatpush2.msra.mxu0 0.0
        %869 = vmatprep.subr.mxu0 0.0
        %870 = vmatpush2.msra.mxu0 0.0
        %871 = vmatprep.subr.mxu0 0.0
        %872 = vmatpush2.msra.mxu0 0.0
        %873 = vmatprep.subr.mxu0 0.0
        %874 = vmatpush2.msra.mxu0 0.0
        %875 = vmatprep.subr.mxu0 0.0
        %876 = vmatpush2.msra.mxu0 0.0
        %877 = vmatprep.subr.mxu0 0.0
        %878 = vmatpush2.msra.mxu0 0.0
        %879 = vmatprep.mubr.f32.mxu0 0.0
        %880 = vmatmul.mubr.f32.gmra.mxu0 %v807
        %v881 = vpop.f32.mrf.mxu0
        %v882 = vadd.f32 %v798, %v881
        %v883 = vpop.f32.mrf.mxu0
        %884 = vmatprep.mubr.f32.mxu0 0.0
        %885 = vmatmul.mubr.f32.gmra.mxu0 %v810
        %v886 = vpop.f32.mrf.mxu0
        %v887 = vadd.f32 %v803, %v886
        %v888 = vpop.f32.mrf.mxu0
        %889 = vdwg.mxu0
        %v890 = vld [vmem:[#allocation2 + $0x2] sm:$0xff]
        %v891 = vld [vmem:[#allocation2 + $0xa] sm:$0xff]
        %v893 = vsel %vm533, %v890, 0
        %v896 = vsel %vm533, %v891, 0
        %v899 = vsel %vm727, %v683, 0
        %901 = vmatprep.subr.mxu0 0.0
        %902 = vmatpush1.msra.mxu0 0.0
        %903 = vmatprep.subr.mxu0 0.0
        %904 = vmatpush1.msra.mxu0 0.0
        %905 = vmatprep.subr.mxu0 0.0
        %906 = vmatpush1.msra.mxu0 0.0
        %907 = vmatprep.subr.mxu0 0.0
        %908 = vmatpush1.msra.mxu0 0.0
        %909 = vmatprep.subr.mxu0 0.0
        %910 = vmatpush1.msra.mxu0 0.0
        %911 = vmatprep.subr.mxu0 0.0
        %912 = vmatpush1.msra.mxu0 0.0
        %913 = vmatprep.subr.mxu0 0.0
        %914 = vmatpush1.msra.mxu0 0.0
        %915 = vmatprep.subr.mxu0 0.0
        %916 = vmatpush1.msra.mxu0 0.0
        %917 = vmatprep.subr.mxu0 0.0
        %918 = vmatpush1.msra.mxu0 0.0
        %919 = vmatprep.subr.mxu0 0.0
        %920 = vmatpush1.msra.mxu0 0.0
        %921 = vmatprep.subr.mxu0 0.0
        %922 = vmatpush1.msra.mxu0 0.0
        %923 = vmatprep.subr.mxu0 0.0
        %924 = vmatpush1.msra.mxu0 0.0
        %925 = vmatprep.subr.mxu0 0.0
        %926 = vmatpush1.msra.mxu0 0.0
        %927 = vmatprep.subr.mxu0 0.0
        %928 = vmatpush1.msra.mxu0 %v899
        %929 = vmatprep.subr.mxu0 0.0
        %930 = vmatpush1.msra.mxu0 %v682
        %931 = vmatprep.subr.mxu0 0.0
        %932 = vmatpush1.msra.mxu0 %v681
        %933 = vmatprep.subr.mxu0 0.0
        %934 = vmatpush2.msra.mxu0 0.0
        %935 = vmatprep.subr.mxu0 0.0
        %936 = vmatpush2.msra.mxu0 0.0
        %937 = vmatprep.subr.mxu0 0.0
        %938 = vmatpush2.msra.mxu0 0.0
        %939 = vmatprep.subr.mxu0 0.0
        %940 = vmatpush2.msra.mxu0 0.0
        %941 = vmatprep.subr.mxu0 0.0
        %942 = vmatpush2.msra.mxu0 0.0
        %943 = vmatprep.subr.mxu0 0.0
        %944 = vmatpush2.msra.mxu0 0.0
        %945 = vmatprep.subr.mxu0 0.0
        %946 = vmatpush2.msra.mxu0 0.0
        %947 = vmatprep.subr.mxu0 0.0
        %948 = vmatpush2.msra.mxu0 0.0
        %949 = vmatprep.subr.mxu0 0.0
        %950 = vmatpush2.msra.mxu0 0.0
        %951 = vmatprep.subr.mxu0 0.0
        %952 = vmatpush2.msra.mxu0 0.0
        %953 = vmatprep.subr.mxu0 0.0
        %954 = vmatpush2.msra.mxu0 0.0
        %955 = vmatprep.subr.mxu0 0.0
        %956 = vmatpush2.msra.mxu0 0.0
        %957 = vmatprep.subr.mxu0 0.0
        %958 = vmatpush2.msra.mxu0 0.0
        %959 = vmatprep.subr.mxu0 0.0
        %960 = vmatpush2.msra.mxu0 0.0
        %961 = vmatprep.subr.mxu0 0.0
        %962 = vmatpush2.msra.mxu0 0.0
        %963 = vmatprep.subr.mxu0 0.0
        %964 = vmatpush2.msra.mxu0 0.0
        %965 = vmatprep.mubr.f32.mxu0 0.0
        %966 = vmatmul.mubr.f32.gmra.mxu0 %v893
        %v967 = vpop.f32.mrf.mxu0
        %v968 = vadd.f32 0.0, %v967
        %v969 = vpop.f32.mrf.mxu0
        %970 = vmatprep.mubr.f32.mxu0 0.0
        %971 = vmatmul.mubr.f32.gmra.mxu0 %v896
        %v972 = vpop.f32.mrf.mxu0
        %v973 = vadd.f32 0.0, %v972
        %v974 = vpop.f32.mrf.mxu0
        %975 = vdwg.mxu0
        %v976 = vadd.f32 %v882, %v968
        %v977 = vadd.f32 %v887, %v973
        %v978 = vld [vmem:[#allocation2 + $0x3] sm:$0xff]
        %v979 = vld [vmem:[#allocation2 + $0xb] sm:$0xff]
        %v981 = vsel %vm533, %v978, 0
        %v984 = vsel %vm533, %v979, 0
        %v987 = vsel %vm727, %v686, 0
        %989 = vmatprep.subr.mxu0 0.0
        %990 = vmatpush1.msra.mxu0 0.0
        %991 = vmatprep.subr.mxu0 0.0
        %992 = vmatpush1.msra.mxu0 0.0
        %993 = vmatprep.subr.mxu0 0.0
        %994 = vmatpush1.msra.mxu0 0.0
        %995 = vmatprep.subr.mxu0 0.0
        %996 = vmatpush1.msra.mxu0 0.0
        %997 = vmatprep.subr.mxu0 0.0
        %998 = vmatpush1.msra.mxu0 0.0
        %999 = vmatprep.subr.mxu0 0.0
        %1000 = vmatpush1.msra.mxu0 0.0
        %1001 = vmatprep.subr.mxu0 0.0
        %1002 = vmatpush1.msra.mxu0 0.0
        %1003 = vmatprep.subr.mxu0 0.0
        %1004 = vmatpush1.msra.mxu0 0.0
        %1005 = vmatprep.subr.mxu0 0.0
        %1006 = vmatpush1.msra.mxu0 0.0
        %1007 = vmatprep.subr.mxu0 0.0
        %1008 = vmatpush1.msra.mxu0 0.0
        %1009 = vmatprep.subr.mxu0 0.0
        %1010 = vmatpush1.msra.mxu0 0.0
        %1011 = vmatprep.subr.mxu0 0.0
        %1012 = vmatpush1.msra.mxu0 0.0
        %1013 = vmatprep.subr.mxu0 0.0
        %1014 = vmatpush1.msra.mxu0 0.0
        %1015 = vmatprep.subr.mxu0 0.0
        %1016 = vmatpush1.msra.mxu0 %v987
        %1017 = vmatprep.subr.mxu0 0.0
        %1018 = vmatpush1.msra.mxu0 %v685
        %1019 = vmatprep.subr.mxu0 0.0
        %1020 = vmatpush1.msra.mxu0 %v684
        %1021 = vmatprep.subr.mxu0 0.0
        %1022 = vmatpush2.msra.mxu0 0.0
        %1023 = vmatprep.subr.mxu0 0.0
        %1024 = vmatpush2.msra.mxu0 0.0
        %1025 = vmatprep.subr.mxu0 0.0
        %1026 = vmatpush2.msra.mxu0 0.0
        %1027 = vmatprep.subr.mxu0 0.0
        %1028 = vmatpush2.msra.mxu0 0.0
        %1029 = vmatprep.subr.mxu0 0.0
        %1030 = vmatpush2.msra.mxu0 0.0
        %1031 = vmatprep.subr.mxu0 0.0
        %1032 = vmatpush2.msra.mxu0 0.0
        %1033 = vmatprep.subr.mxu0 0.0
        %1034 = vmatpush2.msra.mxu0 0.0
        %1035 = vmatprep.subr.mxu0 0.0
        %1036 = vmatpush2.msra.mxu0 0.0
        %1037 = vmatprep.subr.mxu0 0.0
        %1038 = vmatpush2.msra.mxu0 0.0
        %1039 = vmatprep.subr.mxu0 0.0
        %1040 = vmatpush2.msra.mxu0 0.0
        %1041 = vmatprep.subr.mxu0 0.0
        %1042 = vmatpush2.msra.mxu0 0.0
        %1043 = vmatprep.subr.mxu0 0.0
        %1044 = vmatpush2.msra.mxu0 0.0
        %1045 = vmatprep.subr.mxu0 0.0
        %1046 = vmatpush2.msra.mxu0 0.0
        %1047 = vmatprep.subr.mxu0 0.0
        %1048 = vmatpush2.msra.mxu0 0.0
        %1049 = vmatprep.subr.mxu0 0.0
        %1050 = vmatpush2.msra.mxu0 0.0
        %1051 = vmatprep.subr.mxu0 0.0
        %1052 = vmatpush2.msra.mxu0 0.0
        %1053 = vmatprep.mubr.f32.mxu0 0.0
        %1054 = vmatmul.mubr.f32.gmra.mxu0 %v981
        %v1055 = vpop.f32.mrf.mxu0
        %v1056 = vadd.f32 0.0, %v1055
        %v1057 = vpop.f32.mrf.mxu0
        %1058 = vmatprep.mubr.f32.mxu0 0.0
        %1059 = vmatmul.mubr.f32.gmra.mxu0 %v984
        %v1060 = vpop.f32.mrf.mxu0
        %v1061 = vadd.f32 0.0, %v1060
        %v1062 = vpop.f32.mrf.mxu0
        %1063 = vdwg.mxu0
        %v1064 = vadd.f32 %v976, %v1056
        %v1065 = vadd.f32 %v977, %v1061
        %v1066 = vld [vmem:[#allocation2 + $0x4] sm:$0xff]
        %v1067 = vld [vmem:[#allocation2 + $0xc] sm:$0xff]
        %v1069 = vsel %vm533, %v1066, 0
        %v1072 = vsel %vm533, %v1067, 0
        %v1075 = vsel %vm727, %v689, 0
        %1077 = vmatprep.subr.mxu0 0.0
        %1078 = vmatpush1.msra.mxu0 0.0
        %1079 = vmatprep.subr.mxu0 0.0
        %1080 = vmatpush1.msra.mxu0 0.0
        %1081 = vmatprep.subr.mxu0 0.0
        %1082 = vmatpush1.msra.mxu0 0.0
        %1083 = vmatprep.subr.mxu0 0.0
        %1084 = vmatpush1.msra.mxu0 0.0
        %1085 = vmatprep.subr.mxu0 0.0
        %1086 = vmatpush1.msra.mxu0 0.0
        %1087 = vmatprep.subr.mxu0 0.0
        %1088 = vmatpush1.msra.mxu0 0.0
        %1089 = vmatprep.subr.mxu0 0.0
        %1090 = vmatpush1.msra.mxu0 0.0
        %1091 = vmatprep.subr.mxu0 0.0
        %1092 = vmatpush1.msra.mxu0 0.0
        %1093 = vmatprep.subr.mxu0 0.0
        %1094 = vmatpush1.msra.mxu0 0.0
        %1095 = vmatprep.subr.mxu0 0.0
        %1096 = vmatpush1.msra.mxu0 0.0
        %1097 = vmatprep.subr.mxu0 0.0
        %1098 = vmatpush1.msra.mxu0 0.0
        %1099 = vmatprep.subr.mxu0 0.0
        %1100 = vmatpush1.msra.mxu0 0.0
        %1101 = vmatprep.subr.mxu0 0.0
        %1102 = vmatpush1.msra.mxu0 0.0
        %1103 = vmatprep.subr.mxu0 0.0
        %1104 = vmatpush1.msra.mxu0 %v1075
        %1105 = vmatprep.subr.mxu0 0.0
        %1106 = vmatpush1.msra.mxu0 %v688
        %1107 = vmatprep.subr.mxu0 0.0
        %1108 = vmatpush1.msra.mxu0 %v687
        %1109 = vmatprep.subr.mxu0 0.0
        %1110 = vmatpush2.msra.mxu0 0.0
        %1111 = vmatprep.subr.mxu0 0.0
        %1112 = vmatpush2.msra.mxu0 0.0
        %1113 = vmatprep.subr.mxu0 0.0
        %1114 = vmatpush2.msra.mxu0 0.0
        %1115 = vmatprep.subr.mxu0 0.0
        %1116 = vmatpush2.msra.mxu0 0.0
        %1117 = vmatprep.subr.mxu0 0.0
        %1118 = vmatpush2.msra.mxu0 0.0
        %1119 = vmatprep.subr.mxu0 0.0
        %1120 = vmatpush2.msra.mxu0 0.0
        %1121 = vmatprep.subr.mxu0 0.0
        %1122 = vmatpush2.msra.mxu0 0.0
        %1123 = vmatprep.subr.mxu0 0.0
        %1124 = vmatpush2.msra.mxu0 0.0
        %1125 = vmatprep.subr.mxu0 0.0
        %1126 = vmatpush2.msra.mxu0 0.0
        %1127 = vmatprep.subr.mxu0 0.0
        %1128 = vmatpush2.msra.mxu0 0.0
        %1129 = vmatprep.subr.mxu0 0.0
        %1130 = vmatpush2.msra.mxu0 0.0
        %1131 = vmatprep.subr.mxu0 0.0
        %1132 = vmatpush2.msra.mxu0 0.0
        %1133 = vmatprep.subr.mxu0 0.0
        %1134 = vmatpush2.msra.mxu0 0.0
        %1135 = vmatprep.subr.mxu0 0.0
        %1136 = vmatpush2.msra.mxu0 0.0
        %1137 = vmatprep.subr.mxu0 0.0
        %1138 = vmatpush2.msra.mxu0 0.0
        %1139 = vmatprep.subr.mxu0 0.0
        %1140 = vmatpush2.msra.mxu0 0.0
        %1141 = vmatprep.mubr.f32.mxu0 0.0
        %1142 = vmatmul.mubr.f32.gmra.mxu0 %v1069
        %v1143 = vpop.f32.mrf.mxu0
        %v1144 = vadd.f32 0.0, %v1143
        %v1145 = vpop.f32.mrf.mxu0
        %1146 = vmatprep.mubr.f32.mxu0 0.0
        %1147 = vmatmul.mubr.f32.gmra.mxu0 %v1072
        %v1148 = vpop.f32.mrf.mxu0
        %v1149 = vadd.f32 0.0, %v1148
        %v1150 = vpop.f32.mrf.mxu0
        %1151 = vdwg.mxu0
        %v1152 = vadd.f32 %v1064, %v1144
        %v1153 = vadd.f32 %v1065, %v1149
        %v1154 = vld [vmem:[#allocation2 + $0x5] sm:$0xff]
        %v1155 = vld [vmem:[#allocation2 + $0xd] sm:$0xff]
        %v1157 = vsel %vm533, %v1154, 0
        %v1160 = vsel %vm533, %v1155, 0
        %v1163 = vsel %vm727, %v692, 0
        %1165 = vmatprep.subr.mxu0 0.0
        %1166 = vmatpush1.msra.mxu0 0.0
        %1167 = vmatprep.subr.mxu0 0.0
        %1168 = vmatpush1.msra.mxu0 0.0
        %1169 = vmatprep.subr.mxu0 0.0
        %1170 = vmatpush1.msra.mxu0 0.0
        %1171 = vmatprep.subr.mxu0 0.0
        %1172 = vmatpush1.msra.mxu0 0.0
        %1173 = vmatprep.subr.mxu0 0.0
        %1174 = vmatpush1.msra.mxu0 0.0
        %1175 = vmatprep.subr.mxu0 0.0
        %1176 = vmatpush1.msra.mxu0 0.0
        %1177 = vmatprep.subr.mxu0 0.0
        %1178 = vmatpush1.msra.mxu0 0.0
        %1179 = vmatprep.subr.mxu0 0.0
        %1180 = vmatpush1.msra.mxu0 0.0
        %1181 = vmatprep.subr.mxu0 0.0
        %1182 = vmatpush1.msra.mxu0 0.0
        %1183 = vmatprep.subr.mxu0 0.0
        %1184 = vmatpush1.msra.mxu0 0.0
        %1185 = vmatprep.subr.mxu0 0.0
        %1186 = vmatpush1.msra.mxu0 0.0
        %1187 = vmatprep.subr.mxu0 0.0
        %1188 = vmatpush1.msra.mxu0 0.0
        %1189 = vmatprep.subr.mxu0 0.0
        %1190 = vmatpush1.msra.mxu0 0.0
        %1191 = vmatprep.subr.mxu0 0.0
        %1192 = vmatpush1.msra.mxu0 %v1163
        %1193 = vmatprep.subr.mxu0 0.0
        %1194 = vmatpush1.msra.mxu0 %v691
        %1195 = vmatprep.subr.mxu0 0.0
        %1196 = vmatpush1.msra.mxu0 %v690
        %1197 = vmatprep.subr.mxu0 0.0
        %1198 = vmatpush2.msra.mxu0 0.0
        %1199 = vmatprep.subr.mxu0 0.0
        %1200 = vmatpush2.msra.mxu0 0.0
        %1201 = vmatprep.subr.mxu0 0.0
        %1202 = vmatpush2.msra.mxu0 0.0
        %1203 = vmatprep.subr.mxu0 0.0
        %1204 = vmatpush2.msra.mxu0 0.0
        %1205 = vmatprep.subr.mxu0 0.0
        %1206 = vmatpush2.msra.mxu0 0.0
        %1207 = vmatprep.subr.mxu0 0.0
        %1208 = vmatpush2.msra.mxu0 0.0
        %1209 = vmatprep.subr.mxu0 0.0
        %1210 = vmatpush2.msra.mxu0 0.0
        %1211 = vmatprep.subr.mxu0 0.0
        %1212 = vmatpush2.msra.mxu0 0.0
        %1213 = vmatprep.subr.mxu0 0.0
        %1214 = vmatpush2.msra.mxu0 0.0
        %1215 = vmatprep.subr.mxu0 0.0
        %1216 = vmatpush2.msra.mxu0 0.0
        %1217 = vmatprep.subr.mxu0 0.0
        %1218 = vmatpush2.msra.mxu0 0.0
        %1219 = vmatprep.subr.mxu0 0.0
        %1220 = vmatpush2.msra.mxu0 0.0
        %1221 = vmatprep.subr.mxu0 0.0
        %1222 = vmatpush2.msra.mxu0 0.0
        %1223 = vmatprep.subr.mxu0 0.0
        %1224 = vmatpush2.msra.mxu0 0.0
        %1225 = vmatprep.subr.mxu0 0.0
        %1226 = vmatpush2.msra.mxu0 0.0
        %1227 = vmatprep.subr.mxu0 0.0
        %1228 = vmatpush2.msra.mxu0 0.0
        %1229 = vmatprep.mubr.f32.mxu0 0.0
        %1230 = vmatmul.mubr.f32.gmra.mxu0 %v1157
        %v1231 = vpop.f32.mrf.mxu0
        %v1232 = vadd.f32 0.0, %v1231
        %v1233 = vpop.f32.mrf.mxu0
        %1234 = vmatprep.mubr.f32.mxu0 0.0
        %1235 = vmatmul.mubr.f32.gmra.mxu0 %v1160
        %v1236 = vpop.f32.mrf.mxu0
        %v1237 = vadd.f32 0.0, %v1236
        %v1238 = vpop.f32.mrf.mxu0
        %1239 = vdwg.mxu0
        %v1240 = vadd.f32 %v1152, %v1232
        %v1241 = vadd.f32 %v1153, %v1237
        %v1242 = vld [vmem:[#allocation2 + $0x6] sm:$0xff]
        %v1243 = vld [vmem:[#allocation2 + $0xe] sm:$0xff]
        %v1245 = vsel %vm533, %v1242, 0
        %v1248 = vsel %vm533, %v1243, 0
        %v1251 = vsel %vm727, %v695, 0
        %1253 = vmatprep.subr.mxu0 0.0
        %1254 = vmatpush1.msra.mxu0 0.0
        %1255 = vmatprep.subr.mxu0 0.0
        %1256 = vmatpush1.msra.mxu0 0.0
        %1257 = vmatprep.subr.mxu0 0.0
        %1258 = vmatpush1.msra.mxu0 0.0
        %1259 = vmatprep.subr.mxu0 0.0
        %1260 = vmatpush1.msra.mxu0 0.0
        %1261 = vmatprep.subr.mxu0 0.0
        %1262 = vmatpush1.msra.mxu0 0.0
        %1263 = vmatprep.subr.mxu0 0.0
        %1264 = vmatpush1.msra.mxu0 0.0
        %1265 = vmatprep.subr.mxu0 0.0
        %1266 = vmatpush1.msra.mxu0 0.0
        %1267 = vmatprep.subr.mxu0 0.0
        %1268 = vmatpush1.msra.mxu0 0.0
        %1269 = vmatprep.subr.mxu0 0.0
        %1270 = vmatpush1.msra.mxu0 0.0
        %1271 = vmatprep.subr.mxu0 0.0
        %1272 = vmatpush1.msra.mxu0 0.0
        %1273 = vmatprep.subr.mxu0 0.0
        %1274 = vmatpush1.msra.mxu0 0.0
        %1275 = vmatprep.subr.mxu0 0.0
        %1276 = vmatpush1.msra.mxu0 0.0
        %1277 = vmatprep.subr.mxu0 0.0
        %1278 = vmatpush1.msra.mxu0 0.0
        %1279 = vmatprep.subr.mxu0 0.0
        %1280 = vmatpush1.msra.mxu0 %v1251
        %1281 = vmatprep.subr.mxu0 0.0
        %1282 = vmatpush1.msra.mxu0 %v694
        %1283 = vmatprep.subr.mxu0 0.0
        %1284 = vmatpush1.msra.mxu0 %v693
        %1285 = vmatprep.subr.mxu0 0.0
        %1286 = vmatpush2.msra.mxu0 0.0
        %1287 = vmatprep.subr.mxu0 0.0
        %1288 = vmatpush2.msra.mxu0 0.0
        %1289 = vmatprep.subr.mxu0 0.0
        %1290 = vmatpush2.msra.mxu0 0.0
        %1291 = vmatprep.subr.mxu0 0.0
        %1292 = vmatpush2.msra.mxu0 0.0
        %1293 = vmatprep.subr.mxu0 0.0
        %1294 = vmatpush2.msra.mxu0 0.0
        %1295 = vmatprep.subr.mxu0 0.0
        %1296 = vmatpush2.msra.mxu0 0.0
        %1297 = vmatprep.subr.mxu0 0.0
        %1298 = vmatpush2.msra.mxu0 0.0
        %1299 = vmatprep.subr.mxu0 0.0
        %1300 = vmatpush2.msra.mxu0 0.0
        %1301 = vmatprep.subr.mxu0 0.0
        %1302 = vmatpush2.msra.mxu0 0.0
        %1303 = vmatprep.subr.mxu0 0.0
        %1304 = vmatpush2.msra.mxu0 0.0
        %1305 = vmatprep.subr.mxu0 0.0
        %1306 = vmatpush2.msra.mxu0 0.0
        %1307 = vmatprep.subr.mxu0 0.0
        %1308 = vmatpush2.msra.mxu0 0.0
        %1309 = vmatprep.subr.mxu0 0.0
        %1310 = vmatpush2.msra.mxu0 0.0
        %1311 = vmatprep.subr.mxu0 0.0
        %1312 = vmatpush2.msra.mxu0 0.0
        %1313 = vmatprep.subr.mxu0 0.0
        %1314 = vmatpush2.msra.mxu0 0.0
        %1315 = vmatprep.subr.mxu0 0.0
        %1316 = vmatpush2.msra.mxu0 0.0
        %1317 = vmatprep.mubr.f32.mxu0 0.0
        %1318 = vmatmul.mubr.f32.gmra.mxu0 %v1245
        %v1319 = vpop.f32.mrf.mxu0
        %v1320 = vadd.f32 0.0, %v1319
        %v1321 = vpop.f32.mrf.mxu0
        %1322 = vmatprep.mubr.f32.mxu0 0.0
        %1323 = vmatmul.mubr.f32.gmra.mxu0 %v1248
        %v1324 = vpop.f32.mrf.mxu0
        %v1325 = vadd.f32 0.0, %v1324
        %v1326 = vpop.f32.mrf.mxu0
        %1327 = vdwg.mxu0
        %v1328 = vadd.f32 %v1240, %v1320
        %v1329 = vadd.f32 %v1241, %v1325
        %v1330 = vld [vmem:[%s551] sm:$0xff]
        %v1331 = vld [vmem:[%s551 + $0x8] sm:$0xff]
        %v1333 = vsel %vm533, %v1330, 0
        %v1336 = vsel %vm533, %v1331, 0
        %v1339 = vsel %vm727, %v698, 0
        %1341 = vmatprep.subr.mxu0 0.0
        %1342 = vmatpush1.msra.mxu0 0.0
        %1343 = vmatprep.subr.mxu0 0.0
        %1344 = vmatpush1.msra.mxu0 0.0
        %1345 = vmatprep.subr.mxu0 0.0
        %1346 = vmatpush1.msra.mxu0 0.0
        %1347 = vmatprep.subr.mxu0 0.0
        %1348 = vmatpush1.msra.mxu0 0.0
        %1349 = vmatprep.subr.mxu0 0.0
        %1350 = vmatpush1.msra.mxu0 0.0
        %1351 = vmatprep.subr.mxu0 0.0
        %1352 = vmatpush1.msra.mxu0 0.0
        %1353 = vmatprep.subr.mxu0 0.0
        %1354 = vmatpush1.msra.mxu0 0.0
        %1355 = vmatprep.subr.mxu0 0.0
        %1356 = vmatpush1.msra.mxu0 0.0
        %1357 = vmatprep.subr.mxu0 0.0
        %1358 = vmatpush1.msra.mxu0 0.0
        %1359 = vmatprep.subr.mxu0 0.0
        %1360 = vmatpush1.msra.mxu0 0.0
        %1361 = vmatprep.subr.mxu0 0.0
        %1362 = vmatpush1.msra.mxu0 0.0
        %1363 = vmatprep.subr.mxu0 0.0
        %1364 = vmatpush1.msra.mxu0 0.0
        %1365 = vmatprep.subr.mxu0 0.0
        %1366 = vmatpush1.msra.mxu0 0.0
        %1367 = vmatprep.subr.mxu0 0.0
        %1368 = vmatpush1.msra.mxu0 %v1339
        %1369 = vmatprep.subr.mxu0 0.0
        %1370 = vmatpush1.msra.mxu0 %v697
        %1371 = vmatprep.subr.mxu0 0.0
        %1372 = vmatpush1.msra.mxu0 %v696
        %1373 = vmatprep.subr.mxu0 0.0
        %1374 = vmatpush2.msra.mxu0 0.0
        %1375 = vmatprep.subr.mxu0 0.0
        %1376 = vmatpush2.msra.mxu0 0.0
        %1377 = vmatprep.subr.mxu0 0.0
        %1378 = vmatpush2.msra.mxu0 0.0
        %1379 = vmatprep.subr.mxu0 0.0
        %1380 = vmatpush2.msra.mxu0 0.0
        %1381 = vmatprep.subr.mxu0 0.0
        %1382 = vmatpush2.msra.mxu0 0.0
        %1383 = vmatprep.subr.mxu0 0.0
        %1384 = vmatpush2.msra.mxu0 0.0
        %1385 = vmatprep.subr.mxu0 0.0
        %1386 = vmatpush2.msra.mxu0 0.0
        %1387 = vmatprep.subr.mxu0 0.0
        %1388 = vmatpush2.msra.mxu0 0.0
        %1389 = vmatprep.subr.mxu0 0.0
        %1390 = vmatpush2.msra.mxu0 0.0
        %1391 = vmatprep.subr.mxu0 0.0
        %1392 = vmatpush2.msra.mxu0 0.0
        %1393 = vmatprep.subr.mxu0 0.0
        %1394 = vmatpush2.msra.mxu0 0.0
        %1395 = vmatprep.subr.mxu0 0.0
        %1396 = vmatpush2.msra.mxu0 0.0
        %1397 = vmatprep.subr.mxu0 0.0
        %1398 = vmatpush2.msra.mxu0 0.0
        %1399 = vmatprep.subr.mxu0 0.0
        %1400 = vmatpush2.msra.mxu0 0.0
        %1401 = vmatprep.subr.mxu0 0.0
        %1402 = vmatpush2.msra.mxu0 0.0
        %1403 = vmatprep.subr.mxu0 0.0
        %1404 = vmatpush2.msra.mxu0 0.0
        %1405 = vmatprep.mubr.f32.mxu0 0.0
        %1406 = vmatmul.mubr.f32.gmra.mxu0 %v1333
        %v1407 = vpop.f32.mrf.mxu0
        %v1408 = vadd.f32 0.0, %v1407
        %v1409 = vpop.f32.mrf.mxu0
        %1410 = vmatprep.mubr.f32.mxu0 0.0
        %1411 = vmatmul.mubr.f32.gmra.mxu0 %v1336
        %v1412 = vpop.f32.mrf.mxu0
        %v1413 = vadd.f32 0.0, %v1412
        %v1414 = vpop.f32.mrf.mxu0
        %1415 = vdwg.mxu0
        %v1416 = vadd.f32 %v1328, %v1408
        %v1417 = vadd.f32 %v1329, %v1413
        %v1418 = vld [vmem:[%s551 + $0x1] sm:$0xff]
        %v1419 = vld [vmem:[%s551 + $0x9] sm:$0xff]
        %v1421 = vsel %vm533, %v1418, 0
        %v1424 = vsel %vm533, %v1419, 0
        %v1427 = vsel %vm727, %v701, 0
        %1429 = vmatprep.subr.mxu0 0.0
        %1430 = vmatpush1.msra.mxu0 0.0
        %1431 = vmatprep.subr.mxu0 0.0
        %1432 = vmatpush1.msra.mxu0 0.0
        %1433 = vmatprep.subr.mxu0 0.0
        %1434 = vmatpush1.msra.mxu0 0.0
        %1435 = vmatprep.subr.mxu0 0.0
        %1436 = vmatpush1.msra.mxu0 0.0
        %1437 = vmatprep.subr.mxu0 0.0
        %1438 = vmatpush1.msra.mxu0 0.0
        %1439 = vmatprep.subr.mxu0 0.0
        %1440 = vmatpush1.msra.mxu0 0.0
        %1441 = vmatprep.subr.mxu0 0.0
        %1442 = vmatpush1.msra.mxu0 0.0
        %1443 = vmatprep.subr.mxu0 0.0
        %1444 = vmatpush1.msra.mxu0 0.0
        %1445 = vmatprep.subr.mxu0 0.0
        %1446 = vmatpush1.msra.mxu0 0.0
        %1447 = vmatprep.subr.mxu0 0.0
        %1448 = vmatpush1.msra.mxu0 0.0
        %1449 = vmatprep.subr.mxu0 0.0
        %1450 = vmatpush1.msra.mxu0 0.0
        %1451 = vmatprep.subr.mxu0 0.0
        %1452 = vmatpush1.msra.mxu0 0.0
        %1453 = vmatprep.subr.mxu0 0.0
        %1454 = vmatpush1.msra.mxu0 0.0
        %1455 = vmatprep.subr.mxu0 0.0
        %1456 = vmatpush1.msra.mxu0 %v1427
        %1457 = vmatprep.subr.mxu0 0.0
        %1458 = vmatpush1.msra.mxu0 %v700
        %1459 = vmatprep.subr.mxu0 0.0
        %1460 = vmatpush1.msra.mxu0 %v699
        %1461 = vmatprep.subr.mxu0 0.0
        %1462 = vmatpush2.msra.mxu0 0.0
        %1463 = vmatprep.subr.mxu0 0.0
        %1464 = vmatpush2.msra.mxu0 0.0
        %1465 = vmatprep.subr.mxu0 0.0
        %1466 = vmatpush2.msra.mxu0 0.0
        %1467 = vmatprep.subr.mxu0 0.0
        %1468 = vmatpush2.msra.mxu0 0.0
        %1469 = vmatprep.subr.mxu0 0.0
        %1470 = vmatpush2.msra.mxu0 0.0
        %1471 = vmatprep.subr.mxu0 0.0
        %1472 = vmatpush2.msra.mxu0 0.0
        %1473 = vmatprep.subr.mxu0 0.0
        %1474 = vmatpush2.msra.mxu0 0.0
        %1475 = vmatprep.subr.mxu0 0.0
        %1476 = vmatpush2.msra.mxu0 0.0
        %1477 = vmatprep.subr.mxu0 0.0
        %1478 = vmatpush2.msra.mxu0 0.0
        %1479 = vmatprep.subr.mxu0 0.0
        %1480 = vmatpush2.msra.mxu0 0.0
        %1481 = vmatprep.subr.mxu0 0.0
        %1482 = vmatpush2.msra.mxu0 0.0
        %1483 = vmatprep.subr.mxu0 0.0
        %1484 = vmatpush2.msra.mxu0 0.0
        %1485 = vmatprep.subr.mxu0 0.0
        %1486 = vmatpush2.msra.mxu0 0.0
        %1487 = vmatprep.subr.mxu0 0.0
        %1488 = vmatpush2.msra.mxu0 0.0
        %1489 = vmatprep.subr.mxu0 0.0
        %1490 = vmatpush2.msra.mxu0 0.0
        %1491 = vmatprep.subr.mxu0 0.0
        %1492 = vmatpush2.msra.mxu0 0.0
        %1493 = vmatprep.mubr.f32.mxu0 0.0
        %1494 = vmatmul.mubr.f32.gmra.mxu0 %v1421
        %v1495 = vpop.f32.mrf.mxu0
        %v1496 = vadd.f32 0.0, %v1495
        %v1497 = vpop.f32.mrf.mxu0
        %1498 = vmatprep.mubr.f32.mxu0 0.0
        %1499 = vmatmul.mubr.f32.gmra.mxu0 %v1424
        %v1500 = vpop.f32.mrf.mxu0
        %v1501 = vadd.f32 0.0, %v1500
        %v1502 = vpop.f32.mrf.mxu0
        %1503 = vdwg.mxu0
        %v1504 = vadd.f32 %v1416, %v1496
        %v1505 = vadd.f32 %v1417, %v1501
        %v1506 = vld [vmem:[%s551 + $0x2] sm:$0xff]
        %v1507 = vld [vmem:[%s551 + $0xa] sm:$0xff]
        %v1509 = vsel %vm533, %v1506, 0
        %v1512 = vsel %vm533, %v1507, 0
        %v1515 = vsel %vm727, %v704, 0
        %1517 = vmatprep.subr.mxu0 0.0
        %1518 = vmatpush1.msra.mxu0 0.0
        %1519 = vmatprep.subr.mxu0 0.0
        %1520 = vmatpush1.msra.mxu0 0.0
        %1521 = vmatprep.subr.mxu0 0.0
        %1522 = vmatpush1.msra.mxu0 0.0
        %1523 = vmatprep.subr.mxu0 0.0
        %1524 = vmatpush1.msra.mxu0 0.0
        %1525 = vmatprep.subr.mxu0 0.0
        %1526 = vmatpush1.msra.mxu0 0.0
        %1527 = vmatprep.subr.mxu0 0.0
        %1528 = vmatpush1.msra.mxu0 0.0
        %1529 = vmatprep.subr.mxu0 0.0
        %1530 = vmatpush1.msra.mxu0 0.0
        %1531 = vmatprep.subr.mxu0 0.0
        %1532 = vmatpush1.msra.mxu0 0.0
        %1533 = vmatprep.subr.mxu0 0.0
        %1534 = vmatpush1.msra.mxu0 0.0
        %1535 = vmatprep.subr.mxu0 0.0
        %1536 = vmatpush1.msra.mxu0 0.0
        %1537 = vmatprep.subr.mxu0 0.0
        %1538 = vmatpush1.msra.mxu0 0.0
        %1539 = vmatprep.subr.mxu0 0.0
        %1540 = vmatpush1.msra.mxu0 0.0
        %1541 = vmatprep.subr.mxu0 0.0
        %1542 = vmatpush1.msra.mxu0 0.0
        %1543 = vmatprep.subr.mxu0 0.0
        %1544 = vmatpush1.msra.mxu0 %v1515
        %1545 = vmatprep.subr.mxu0 0.0
        %1546 = vmatpush1.msra.mxu0 %v703
        %1547 = vmatprep.subr.mxu0 0.0
        %1548 = vmatpush1.msra.mxu0 %v702
        %1549 = vmatprep.subr.mxu0 0.0
        %1550 = vmatpush2.msra.mxu0 0.0
        %1551 = vmatprep.subr.mxu0 0.0
        %1552 = vmatpush2.msra.mxu0 0.0
        %1553 = vmatprep.subr.mxu0 0.0
        %1554 = vmatpush2.msra.mxu0 0.0
        %1555 = vmatprep.subr.mxu0 0.0
        %1556 = vmatpush2.msra.mxu0 0.0
        %1557 = vmatprep.subr.mxu0 0.0
        %1558 = vmatpush2.msra.mxu0 0.0
        %1559 = vmatprep.subr.mxu0 0.0
        %1560 = vmatpush2.msra.mxu0 0.0
        %1561 = vmatprep.subr.mxu0 0.0
        %1562 = vmatpush2.msra.mxu0 0.0
        %1563 = vmatprep.subr.mxu0 0.0
        %1564 = vmatpush2.msra.mxu0 0.0
        %1565 = vmatprep.subr.mxu0 0.0
        %1566 = vmatpush2.msra.mxu0 0.0
        %1567 = vmatprep.subr.mxu0 0.0
        %1568 = vmatpush2.msra.mxu0 0.0
        %1569 = vmatprep.subr.mxu0 0.0
        %1570 = vmatpush2.msra.mxu0 0.0
        %1571 = vmatprep.subr.mxu0 0.0
        %1572 = vmatpush2.msra.mxu0 0.0
        %1573 = vmatprep.subr.mxu0 0.0
        %1574 = vmatpush2.msra.mxu0 0.0
        %1575 = vmatprep.subr.mxu0 0.0
        %1576 = vmatpush2.msra.mxu0 0.0
        %1577 = vmatprep.subr.mxu0 0.0
        %1578 = vmatpush2.msra.mxu0 0.0
        %1579 = vmatprep.subr.mxu0 0.0
        %1580 = vmatpush2.msra.mxu0 0.0
        %1581 = vmatprep.mubr.f32.mxu0 0.0
        %1582 = vmatmul.mubr.f32.gmra.mxu0 %v1509
        %v1583 = vpop.f32.mrf.mxu0
        %v1584 = vadd.f32 0.0, %v1583
        %v1585 = vpop.f32.mrf.mxu0
        %1586 = vmatprep.mubr.f32.mxu0 0.0
        %1587 = vmatmul.mubr.f32.gmra.mxu0 %v1512
        %v1588 = vpop.f32.mrf.mxu0
        %v1589 = vadd.f32 0.0, %v1588
        %v1590 = vpop.f32.mrf.mxu0
        %1591 = vdwg.mxu0
        %v1592 = vadd.f32 %v1504, %v1584
        %v1593 = vadd.f32 %v1505, %v1589
        %v1594 = vld [vmem:[%s551 + $0x3] sm:$0xff]
        %v1595 = vld [vmem:[%s551 + $0xb] sm:$0xff]
        %v1597 = vsel %vm533, %v1594, 0
        %v1600 = vsel %vm533, %v1595, 0
        %v1603 = vsel %vm727, %v707, 0
        %1605 = vmatprep.subr.mxu0 0.0
        %1606 = vmatpush1.msra.mxu0 0.0
        %1607 = vmatprep.subr.mxu0 0.0
        %1608 = vmatpush1.msra.mxu0 0.0
        %1609 = vmatprep.subr.mxu0 0.0
        %1610 = vmatpush1.msra.mxu0 0.0
        %1611 = vmatprep.subr.mxu0 0.0
        %1612 = vmatpush1.msra.mxu0 0.0
        %1613 = vmatprep.subr.mxu0 0.0
        %1614 = vmatpush1.msra.mxu0 0.0
        %1615 = vmatprep.subr.mxu0 0.0
        %1616 = vmatpush1.msra.mxu0 0.0
        %1617 = vmatprep.subr.mxu0 0.0
        %1618 = vmatpush1.msra.mxu0 0.0
        %1619 = vmatprep.subr.mxu0 0.0
        %1620 = vmatpush1.msra.mxu0 0.0
        %1621 = vmatprep.subr.mxu0 0.0
        %1622 = vmatpush1.msra.mxu0 0.0
        %1623 = vmatprep.subr.mxu0 0.0
        %1624 = vmatpush1.msra.mxu0 0.0
        %1625 = vmatprep.subr.mxu0 0.0
        %1626 = vmatpush1.msra.mxu0 0.0
        %1627 = vmatprep.subr.mxu0 0.0
        %1628 = vmatpush1.msra.mxu0 0.0
        %1629 = vmatprep.subr.mxu0 0.0
        %1630 = vmatpush1.msra.mxu0 0.0
        %1631 = vmatprep.subr.mxu0 0.0
        %1632 = vmatpush1.msra.mxu0 %v1603
        %1633 = vmatprep.subr.mxu0 0.0
        %1634 = vmatpush1.msra.mxu0 %v706
        %1635 = vmatprep.subr.mxu0 0.0
        %1636 = vmatpush1.msra.mxu0 %v705
        %1637 = vmatprep.subr.mxu0 0.0
        %1638 = vmatpush2.msra.mxu0 0.0
        %1639 = vmatprep.subr.mxu0 0.0
        %1640 = vmatpush2.msra.mxu0 0.0
        %1641 = vmatprep.subr.mxu0 0.0
        %1642 = vmatpush2.msra.mxu0 0.0
        %1643 = vmatprep.subr.mxu0 0.0
        %1644 = vmatpush2.msra.mxu0 0.0
        %1645 = vmatprep.subr.mxu0 0.0
        %1646 = vmatpush2.msra.mxu0 0.0
        %1647 = vmatprep.subr.mxu0 0.0
        %1648 = vmatpush2.msra.mxu0 0.0
        %1649 = vmatprep.subr.mxu0 0.0
        %1650 = vmatpush2.msra.mxu0 0.0
        %1651 = vmatprep.subr.mxu0 0.0
        %1652 = vmatpush2.msra.mxu0 0.0
        %1653 = vmatprep.subr.mxu0 0.0
        %1654 = vmatpush2.msra.mxu0 0.0
        %1655 = vmatprep.subr.mxu0 0.0
        %1656 = vmatpush2.msra.mxu0 0.0
        %1657 = vmatprep.subr.mxu0 0.0
        %1658 = vmatpush2.msra.mxu0 0.0
        %1659 = vmatprep.subr.mxu0 0.0
        %1660 = vmatpush2.msra.mxu0 0.0
        %1661 = vmatprep.subr.mxu0 0.0
        %1662 = vmatpush2.msra.mxu0 0.0
        %1663 = vmatprep.subr.mxu0 0.0
        %1664 = vmatpush2.msra.mxu0 0.0
        %1665 = vmatprep.subr.mxu0 0.0
        %1666 = vmatpush2.msra.mxu0 0.0
        %1667 = vmatprep.subr.mxu0 0.0
        %1668 = vmatpush2.msra.mxu0 0.0
        %1669 = vmatprep.mubr.f32.mxu0 0.0
        %1670 = vmatmul.mubr.f32.gmra.mxu0 %v1597
        %v1671 = vpop.f32.mrf.mxu0
        %v1672 = vadd.f32 0.0, %v1671
        %v1673 = vpop.f32.mrf.mxu0
        %1674 = vmatprep.mubr.f32.mxu0 0.0
        %1675 = vmatmul.mubr.f32.gmra.mxu0 %v1600
        %v1676 = vpop.f32.mrf.mxu0
        %v1677 = vadd.f32 0.0, %v1676
        %v1678 = vpop.f32.mrf.mxu0
        %1679 = vdwg.mxu0
        %v1680 = vadd.f32 %v1592, %v1672
        %v1681 = vadd.f32 %v1593, %v1677
        %v1682 = vld [vmem:[%s551 + $0x4] sm:$0xff]
        %v1683 = vld [vmem:[%s551 + $0xc] sm:$0xff]
        %v1685 = vsel %vm533, %v1682, 0
        %v1688 = vsel %vm533, %v1683, 0
        %v1691 = vsel %vm727, %v710, 0
        %1693 = vmatprep.subr.mxu0 0.0
        %1694 = vmatpush1.msra.mxu0 0.0
        %1695 = vmatprep.subr.mxu0 0.0
        %1696 = vmatpush1.msra.mxu0 0.0
        %1697 = vmatprep.subr.mxu0 0.0
        %1698 = vmatpush1.msra.mxu0 0.0
        %1699 = vmatprep.subr.mxu0 0.0
        %1700 = vmatpush1.msra.mxu0 0.0
        %1701 = vmatprep.subr.mxu0 0.0
        %1702 = vmatpush1.msra.mxu0 0.0
        %1703 = vmatprep.subr.mxu0 0.0
        %1704 = vmatpush1.msra.mxu0 0.0
        %1705 = vmatprep.subr.mxu0 0.0
        %1706 = vmatpush1.msra.mxu0 0.0
        %1707 = vmatprep.subr.mxu0 0.0
        %1708 = vmatpush1.msra.mxu0 0.0
        %1709 = vmatprep.subr.mxu0 0.0
        %1710 = vmatpush1.msra.mxu0 0.0
        %1711 = vmatprep.subr.mxu0 0.0
        %1712 = vmatpush1.msra.mxu0 0.0
        %1713 = vmatprep.subr.mxu0 0.0
        %1714 = vmatpush1.msra.mxu0 0.0
        %1715 = vmatprep.subr.mxu0 0.0
        %1716 = vmatpush1.msra.mxu0 0.0
        %1717 = vmatprep.subr.mxu0 0.0
        %1718 = vmatpush1.msra.mxu0 0.0
        %1719 = vmatprep.subr.mxu0 0.0
        %1720 = vmatpush1.msra.mxu0 %v1691
        %1721 = vmatprep.subr.mxu0 0.0
        %1722 = vmatpush1.msra.mxu0 %v709
        %1723 = vmatprep.subr.mxu0 0.0
        %1724 = vmatpush1.msra.mxu0 %v708
        %1725 = vmatprep.subr.mxu0 0.0
        %1726 = vmatpush2.msra.mxu0 0.0
        %1727 = vmatprep.subr.mxu0 0.0
        %1728 = vmatpush2.msra.mxu0 0.0
        %1729 = vmatprep.subr.mxu0 0.0
        %1730 = vmatpush2.msra.mxu0 0.0
        %1731 = vmatprep.subr.mxu0 0.0
        %1732 = vmatpush2.msra.mxu0 0.0
        %1733 = vmatprep.subr.mxu0 0.0
        %1734 = vmatpush2.msra.mxu0 0.0
        %1735 = vmatprep.subr.mxu0 0.0
        %1736 = vmatpush2.msra.mxu0 0.0
        %1737 = vmatprep.subr.mxu0 0.0
        %1738 = vmatpush2.msra.mxu0 0.0
        %1739 = vmatprep.subr.mxu0 0.0
        %1740 = vmatpush2.msra.mxu0 0.0
        %1741 = vmatprep.subr.mxu0 0.0
        %1742 = vmatpush2.msra.mxu0 0.0
        %1743 = vmatprep.subr.mxu0 0.0
        %1744 = vmatpush2.msra.mxu0 0.0
        %1745 = vmatprep.subr.mxu0 0.0
        %1746 = vmatpush2.msra.mxu0 0.0
        %1747 = vmatprep.subr.mxu0 0.0
        %1748 = vmatpush2.msra.mxu0 0.0
        %1749 = vmatprep.subr.mxu0 0.0
        %1750 = vmatpush2.msra.mxu0 0.0
        %1751 = vmatprep.subr.mxu0 0.0
        %1752 = vmatpush2.msra.mxu0 0.0
        %1753 = vmatprep.subr.mxu0 0.0
        %1754 = vmatpush2.msra.mxu0 0.0
        %1755 = vmatprep.subr.mxu0 0.0
        %1756 = vmatpush2.msra.mxu0 0.0
        %1757 = vmatprep.mubr.f32.mxu0 0.0
        %1758 = vmatmul.mubr.f32.gmra.mxu0 %v1685
        %v1759 = vpop.f32.mrf.mxu0
        %v1760 = vadd.f32 0.0, %v1759
        %v1761 = vpop.f32.mrf.mxu0
        %1762 = vmatprep.mubr.f32.mxu0 0.0
        %1763 = vmatmul.mubr.f32.gmra.mxu0 %v1688
        %v1764 = vpop.f32.mrf.mxu0
        %v1765 = vadd.f32 0.0, %v1764
        %v1766 = vpop.f32.mrf.mxu0
        %1767 = vdwg.mxu0
        %v1768 = vadd.f32 %v1680, %v1760
        %v1769 = vadd.f32 %v1681, %v1765
        %v1770 = vld [vmem:[%s551 + $0x5] sm:$0xff]
        %v1771 = vld [vmem:[%s551 + $0xd] sm:$0xff]
        %v1773 = vsel %vm533, %v1770, 0
        %v1776 = vsel %vm533, %v1771, 0
        %v1779 = vsel %vm727, %v713, 0
        %1781 = vmatprep.subr.mxu0 0.0
        %1782 = vmatpush1.msra.mxu0 0.0
        %1783 = vmatprep.subr.mxu0 0.0
        %1784 = vmatpush1.msra.mxu0 0.0
        %1785 = vmatprep.subr.mxu0 0.0
        %1786 = vmatpush1.msra.mxu0 0.0
        %1787 = vmatprep.subr.mxu0 0.0
        %1788 = vmatpush1.msra.mxu0 0.0
        %1789 = vmatprep.subr.mxu0 0.0
        %1790 = vmatpush1.msra.mxu0 0.0
        %1791 = vmatprep.subr.mxu0 0.0
        %1792 = vmatpush1.msra.mxu0 0.0
        %1793 = vmatprep.subr.mxu0 0.0
        %1794 = vmatpush1.msra.mxu0 0.0
        %1795 = vmatprep.subr.mxu0 0.0
        %1796 = vmatpush1.msra.mxu0 0.0
        %1797 = vmatprep.subr.mxu0 0.0
        %1798 = vmatpush1.msra.mxu0 0.0
        %1799 = vmatprep.subr.mxu0 0.0
        %1800 = vmatpush1.msra.mxu0 0.0
        %1801 = vmatprep.subr.mxu0 0.0
        %1802 = vmatpush1.msra.mxu0 0.0
        %1803 = vmatprep.subr.mxu0 0.0
        %1804 = vmatpush1.msra.mxu0 0.0
        %1805 = vmatprep.subr.mxu0 0.0
        %1806 = vmatpush1.msra.mxu0 0.0
        %1807 = vmatprep.subr.mxu0 0.0
        %1808 = vmatpush1.msra.mxu0 %v1779
        %1809 = vmatprep.subr.mxu0 0.0
        %1810 = vmatpush1.msra.mxu0 %v712
        %1811 = vmatprep.subr.mxu0 0.0
        %1812 = vmatpush1.msra.mxu0 %v711
        %1813 = vmatprep.subr.mxu0 0.0
        %1814 = vmatpush2.msra.mxu0 0.0
        %1815 = vmatprep.subr.mxu0 0.0
        %1816 = vmatpush2.msra.mxu0 0.0
        %1817 = vmatprep.subr.mxu0 0.0
        %1818 = vmatpush2.msra.mxu0 0.0
        %1819 = vmatprep.subr.mxu0 0.0
        %1820 = vmatpush2.msra.mxu0 0.0
        %1821 = vmatprep.subr.mxu0 0.0
        %1822 = vmatpush2.msra.mxu0 0.0
        %1823 = vmatprep.subr.mxu0 0.0
        %1824 = vmatpush2.msra.mxu0 0.0
        %1825 = vmatprep.subr.mxu0 0.0
        %1826 = vmatpush2.msra.mxu0 0.0
        %1827 = vmatprep.subr.mxu0 0.0
        %1828 = vmatpush2.msra.mxu0 0.0
        %1829 = vmatprep.subr.mxu0 0.0
        %1830 = vmatpush2.msra.mxu0 0.0
        %1831 = vmatprep.subr.mxu0 0.0
        %1832 = vmatpush2.msra.mxu0 0.0
        %1833 = vmatprep.subr.mxu0 0.0
        %1834 = vmatpush2.msra.mxu0 0.0
        %1835 = vmatprep.subr.mxu0 0.0
        %1836 = vmatpush2.msra.mxu0 0.0
        %1837 = vmatprep.subr.mxu0 0.0
        %1838 = vmatpush2.msra.mxu0 0.0
        %1839 = vmatprep.subr.mxu0 0.0
        %1840 = vmatpush2.msra.mxu0 0.0
        %1841 = vmatprep.subr.mxu0 0.0
        %1842 = vmatpush2.msra.mxu0 0.0
        %1843 = vmatprep.subr.mxu0 0.0
        %1844 = vmatpush2.msra.mxu0 0.0
        %1845 = vmatprep.mubr.f32.mxu0 0.0
        %1846 = vmatmul.mubr.f32.gmra.mxu0 %v1773
        %v1847 = vpop.f32.mrf.mxu0
        %v1848 = vadd.f32 0.0, %v1847
        %v1849 = vpop.f32.mrf.mxu0
        %1850 = vmatprep.mubr.f32.mxu0 0.0
        %1851 = vmatmul.mubr.f32.gmra.mxu0 %v1776
        %v1852 = vpop.f32.mrf.mxu0
        %v1853 = vadd.f32 0.0, %v1852
        %v1854 = vpop.f32.mrf.mxu0
        %1855 = vdwg.mxu0
        %v1856 = vadd.f32 %v1768, %v1848
        %v1857 = vadd.f32 %v1769, %v1853
        %v1858 = vld [vmem:[%s551 + $0x6] sm:$0xff]
        %v1859 = vld [vmem:[%s551 + $0xe] sm:$0xff]
        %v1861 = vsel %vm533, %v1858, 0
        %v1864 = vsel %vm533, %v1859, 0
        %v1867 = vsel %vm727, %v716, 0
        %1869 = vmatprep.subr.mxu0 0.0
        %1870 = vmatpush1.msra.mxu0 0.0
        %1871 = vmatprep.subr.mxu0 0.0
        %1872 = vmatpush1.msra.mxu0 0.0
        %1873 = vmatprep.subr.mxu0 0.0
        %1874 = vmatpush1.msra.mxu0 0.0
        %1875 = vmatprep.subr.mxu0 0.0
        %1876 = vmatpush1.msra.mxu0 0.0
        %1877 = vmatprep.subr.mxu0 0.0
        %1878 = vmatpush1.msra.mxu0 0.0
        %1879 = vmatprep.subr.mxu0 0.0
        %1880 = vmatpush1.msra.mxu0 0.0
        %1881 = vmatprep.subr.mxu0 0.0
        %1882 = vmatpush1.msra.mxu0 0.0
        %1883 = vmatprep.subr.mxu0 0.0
        %1884 = vmatpush1.msra.mxu0 0.0
        %1885 = vmatprep.subr.mxu0 0.0
        %1886 = vmatpush1.msra.mxu0 0.0
        %1887 = vmatprep.subr.mxu0 0.0
        %1888 = vmatpush1.msra.mxu0 0.0
        %1889 = vmatprep.subr.mxu0 0.0
        %1890 = vmatpush1.msra.mxu0 0.0
        %1891 = vmatprep.subr.mxu0 0.0
        %1892 = vmatpush1.msra.mxu0 0.0
        %1893 = vmatprep.subr.mxu0 0.0
        %1894 = vmatpush1.msra.mxu0 0.0
        %1895 = vmatprep.subr.mxu0 0.0
        %1896 = vmatpush1.msra.mxu0 %v1867
        %1897 = vmatprep.subr.mxu0 0.0
        %1898 = vmatpush1.msra.mxu0 %v715
        %1899 = vmatprep.subr.mxu0 0.0
        %1900 = vmatpush1.msra.mxu0 %v714
        %1901 = vmatprep.subr.mxu0 0.0
        %1902 = vmatpush2.msra.mxu0 0.0
        %1903 = vmatprep.subr.mxu0 0.0
        %1904 = vmatpush2.msra.mxu0 0.0
        %1905 = vmatprep.subr.mxu0 0.0
        %1906 = vmatpush2.msra.mxu0 0.0
        %1907 = vmatprep.subr.mxu0 0.0
        %1908 = vmatpush2.msra.mxu0 0.0
        %1909 = vmatprep.subr.mxu0 0.0
        %1910 = vmatpush2.msra.mxu0 0.0
        %1911 = vmatprep.subr.mxu0 0.0
        %1912 = vmatpush2.msra.mxu0 0.0
        %1913 = vmatprep.subr.mxu0 0.0
        %1914 = vmatpush2.msra.mxu0 0.0
        %1915 = vmatprep.subr.mxu0 0.0
        %1916 = vmatpush2.msra.mxu0 0.0
        %1917 = vmatprep.subr.mxu0 0.0
        %1918 = vmatpush2.msra.mxu0 0.0
        %1919 = vmatprep.subr.mxu0 0.0
        %1920 = vmatpush2.msra.mxu0 0.0
        %1921 = vmatprep.subr.mxu0 0.0
        %1922 = vmatpush2.msra.mxu0 0.0
        %1923 = vmatprep.subr.mxu0 0.0
        %1924 = vmatpush2.msra.mxu0 0.0
        %1925 = vmatprep.subr.mxu0 0.0
        %1926 = vmatpush2.msra.mxu0 0.0
        %1927 = vmatprep.subr.mxu0 0.0
        %1928 = vmatpush2.msra.mxu0 0.0
        %1929 = vmatprep.subr.mxu0 0.0
        %1930 = vmatpush2.msra.mxu0 0.0
        %1931 = vmatprep.subr.mxu0 0.0
        %1932 = vmatpush2.msra.mxu0 0.0
        %1933 = vmatprep.mubr.f32.mxu0 0.0
        %1934 = vmatmul.mubr.f32.gmra.mxu0 %v1861
        %v1935 = vpop.f32.mrf.mxu0
        %v1936 = vadd.f32 0.0, %v1935
        %v1937 = vpop.f32.mrf.mxu0
        %1938 = vmatprep.mubr.f32.mxu0 0.0
        %1939 = vmatmul.mubr.f32.gmra.mxu0 %v1864
        %v1940 = vpop.f32.mrf.mxu0
        %v1941 = vadd.f32 0.0, %v1940
        %v1942 = vpop.f32.mrf.mxu0
        %1943 = vdwg.mxu0
        %v1944 = vadd.f32 %v1856, %v1936
        %v1945 = vadd.f32 %v1857, %v1941
        %v1946 = vxor.u32 %v1944, 2147483648
        %v1947 = vxor.u32 %v1945, 2147483648
        %v1948 = vmul.f32 %v1946, 1.442695
        %v1949 = vpow.pop %v1948
        %v1950 = vmul.f32 %v1947, 1.442695
        %v1951 = vpow.pop %v1950
        %v1952 = vadd.f32 %v1949, 1.0
        %v1953 = vadd.f32 %v1951, 1.0
        %v1954 = vrcp.pop %v1952
        %v1955 = vmul.f32 1.0, %v1954
        %v1956 = vrcp.pop %v1953
        %v1957 = vmul.f32 1.0, %v1956
        %v1958 = vlaneseq
        %vm1959 = vcmp.ge.s32.totalorder %v1958, 0
        %vm1960 = vcmp.lt.s32.totalorder %v1958, 16
        %vm1961 = vmand %vm1959, %vm1960
        %1962 = vst.msk [vmem:[#allocation3] sm:$0x1] %vm1961, %v1955
        %v1965 = vunpack.c.l.s4 1966171168
        %v1966 = vunpack.c.0.s8 %v1965
        %v1967 = vlaneseq
        %v1968 = vshrl.u32 %v1967, 7
        %v1969 = vsub.s32 %v1966, %v1968
        %v1970 = vrot.slane %v1955, %v1969
        %v1971 = vcombine.high %v1970, %v1970
        %v1973 = vunpack.c.l.s4 1966171168
        %v1974 = vunpack.c.0.s8 %v1973
        %v1975 = vlaneseq
        %v1976 = vshrl.u32 %v1975, 7
        %v1977 = vsub.s32 %v1974, %v1976
        %v1978 = vrot.slane %v1970, %v1977
        %v1980 = vunpack.c.l.s4 1966171168
        %v1981 = vunpack.c.0.s8 %v1980
        %v1982 = vlaneseq
        %v1983 = vshrl.u32 %v1982, 7
        %v1984 = vsub.s32 %v1981, %v1983
        %v1985 = vrot.slane %v1971, %v1984
        %1986 = vrot.lane.b32.xlu0 %v1985, 16
        %v1987 = vpop.permute.xlu0 %1986
        %vm1989 = vcmp.ge.s32.totalorder %v1958, 16
        %vm1990 = vcmp.lt.s32.totalorder %v1958, 32
        %vm1991 = vmand %vm1989, %vm1990
        %1992 = vst.msk [vmem:[#allocation3] sm:$0x1] %vm1991, %v1987
        %v1993 = vcombine.high %v1978, %v1978
        %1994 = vrot.lane.b32.xlu0 %v1993, 32
        %v1995 = vpop.permute.xlu0 %1994
        %vm1997 = vcmp.ge.s32.totalorder %v1958, 32
        %vm1998 = vcmp.lt.s32.totalorder %v1958, 48
        %vm1999 = vmand %vm1997, %vm1998
        %2000 = vst.msk [vmem:[#allocation3] sm:$0x1] %vm1999, %v1995
        %v2001 = vcombine.high %v1985, %v1985
        %2002 = vrot.lane.b32.xlu0 %v2001, 48
        %v2003 = vpop.permute.xlu0 %2002
        %vm2005 = vcmp.ge.s32.totalorder %v1958, 48
        %vm2006 = vcmp.lt.s32.totalorder %v1958, 64
        %vm2007 = vmand %vm2005, %vm2006
        %2008 = vst.msk [vmem:[#allocation3] sm:$0x1] %vm2007, %v2003
        %v2009 = vcombine.high %v1955, %v1955
        %v2011 = vunpack.c.l.s4 1966171168
        %v2012 = vunpack.c.0.s8 %v2011
        %v2013 = vlaneseq
        %v2014 = vshrl.u32 %v2013, 7
        %v2015 = vsub.s32 %v2012, %v2014
        %v2016 = vrot.slane %v2009, %v2015
        %v2018 = vunpack.c.l.s4 1966171168
        %v2019 = vunpack.c.0.s8 %v2018
        %v2020 = vlaneseq
        %v2021 = vshrl.u32 %v2020, 7
        %v2022 = vsub.s32 %v2019, %v2021
        %v2023 = vrot.slane %v2016, %v2022
        %2024 = vrot.lane.b32.xlu0 %v2023, 64
        %v2025 = vpop.permute.xlu0 %2024
        %vm2027 = vcmp.ge.s32.totalorder %v1958, 64
        %vm2028 = vcmp.lt.s32.totalorder %v1958, 80
        %vm2029 = vmand %vm2027, %vm2028
        %2030 = vst.msk [vmem:[#allocation3] sm:$0x1] %vm2029, %v2025
        %v2031 = vcombine.high %v2016, %v2016
        %v2033 = vunpack.c.l.s4 1966171168
        %v2034 = vunpack.c.0.s8 %v2033
        %v2035 = vlaneseq
        %v2036 = vshrl.u32 %v2035, 7
        %v2037 = vsub.s32 %v2034, %v2036
        %v2038 = vrot.slane %v2031, %v2037
        %2039 = vrot.lane.b32.xlu0 %v2038, 80
        %v2040 = vpop.permute.xlu0 %2039
        %vm2042 = vcmp.ge.s32.totalorder %v1958, 80
        %vm2043 = vcmp.lt.s32.totalorder %v1958, 96
        %vm2044 = vmand %vm2042, %vm2043
        %2045 = vst.msk [vmem:[#allocation3] sm:$0x1] %vm2044, %v2040
        %v2046 = vcombine.high %v2023, %v2023
        %2047 = vrot.lane.b32.xlu0 %v2046, 96
        %v2048 = vpop.permute.xlu0 %2047
        %vm2050 = vcmp.ge.s32.totalorder %v1958, 96
        %vm2051 = vcmp.lt.s32.totalorder %v1958, 112
        %vm2052 = vmand %vm2050, %vm2051
        %2053 = vst.msk [vmem:[#allocation3] sm:$0x1] %vm2052, %v2048
        %v2054 = vcombine.high %v2038, %v2038
        %2055 = vrot.lane.b32.xlu0 %v2054, 112
        %v2056 = vpop.permute.xlu0 %2055
        %vm2058 = vcmp.ge.s32.totalorder %v1958, 112
        %vm2059 = vcmp.lt.s32.totalorder %v1958, 128
        %vm2060 = vmand %vm2058, %vm2059
        %2061 = vst.msk [vmem:[#allocation3] sm:$0x1] %vm2060, %v2056
        %2062 = vst.msk [vmem:[#allocation3 + $0x1] sm:$0x1] %vm1961, %v1957
        %v2065 = vunpack.c.l.s4 1966171168
        %v2066 = vunpack.c.0.s8 %v2065
        %v2067 = vlaneseq
        %v2068 = vshrl.u32 %v2067, 7
        %v2069 = vsub.s32 %v2066, %v2068
        %v2070 = vrot.slane %v1957, %v2069
        %v2071 = vcombine.high %v2070, %v2070
        %v2073 = vunpack.c.l.s4 1966171168
        %v2074 = vunpack.c.0.s8 %v2073
        %v2075 = vlaneseq
        %v2076 = vshrl.u32 %v2075, 7
        %v2077 = vsub.s32 %v2074, %v2076
        %v2078 = vrot.slane %v2070, %v2077
        %v2080 = vunpack.c.l.s4 1966171168
        %v2081 = vunpack.c.0.s8 %v2080
        %v2082 = vlaneseq
        %v2083 = vshrl.u32 %v2082, 7
        %v2084 = vsub.s32 %v2081, %v2083
        %v2085 = vrot.slane %v2071, %v2084
        %2086 = vrot.lane.b32.xlu0 %v2085, 16
        %v2087 = vpop.permute.xlu0 %2086
        %2089 = vst.msk [vmem:[#allocation3 + $0x1] sm:$0x1] %vm1991, %v2087
        %v2090 = vcombine.high %v2078, %v2078
        %2091 = vrot.lane.b32.xlu0 %v2090, 32
        %v2092 = vpop.permute.xlu0 %2091
        %2094 = vst.msk [vmem:[#allocation3 + $0x1] sm:$0x1] %vm1999, %v2092
        %v2095 = vcombine.high %v2085, %v2085
        %2096 = vrot.lane.b32.xlu0 %v2095, 48
        %v2097 = vpop.permute.xlu0 %2096
        %2099 = vst.msk [vmem:[#allocation3 + $0x1] sm:$0x1] %vm2007, %v2097
        %v2100 = vcombine.high %v1957, %v1957
        %v2102 = vunpack.c.l.s4 1966171168
        %v2103 = vunpack.c.0.s8 %v2102
        %v2104 = vlaneseq
        %v2105 = vshrl.u32 %v2104, 7
        %v2106 = vsub.s32 %v2103, %v2105
        %v2107 = vrot.slane %v2100, %v2106
        %v2109 = vunpack.c.l.s4 1966171168
        %v2110 = vunpack.c.0.s8 %v2109
        %v2111 = vlaneseq
        %v2112 = vshrl.u32 %v2111, 7
        %v2113 = vsub.s32 %v2110, %v2112
        %v2114 = vrot.slane %v2107, %v2113
        %2115 = vrot.lane.b32.xlu0 %v2114, 64
        %v2116 = vpop.permute.xlu0 %2115
        %2118 = vst.msk [vmem:[#allocation3 + $0x1] sm:$0x1] %vm2029, %v2116
        %v2119 = vcombine.high %v2107, %v2107
        %v2121 = vunpack.c.l.s4 1966171168
        %v2122 = vunpack.c.0.s8 %v2121
        %v2123 = vlaneseq
        %v2124 = vshrl.u32 %v2123, 7
        %v2125 = vsub.s32 %v2122, %v2124
        %v2126 = vrot.slane %v2119, %v2125
        %2127 = vrot.lane.b32.xlu0 %v2126, 80
        %v2128 = vpop.permute.xlu0 %2127
        %2130 = vst.msk [vmem:[#allocation3 + $0x1] sm:$0x1] %vm2044, %v2128
        %v2131 = vcombine.high %v2114, %v2114
        %2132 = vrot.lane.b32.xlu0 %v2131, 96
        %v2133 = vpop.permute.xlu0 %2132
        %2135 = vst.msk [vmem:[#allocation3 + $0x1] sm:$0x1] %vm2052, %v2133
        %v2136 = vcombine.high %v2126, %v2126
        %2137 = vrot.lane.b32.xlu0 %v2136, 112
        %v2138 = vpop.permute.xlu0 %2137
        %2140 = vst.msk [vmem:[#allocation3 + $0x1] sm:$0x1] %vm2060, %v2138
        %v2141 = vld [vmem:[#allocation3] sm:$0x3]
        %v2143 = vlaneseq
        %v2144 = vshrl.u32 %v2143, 7
        %v2145 = vsub.s32 0, %v2144
        %v2146 = vrot.slane %v2141, %v2145
        %v2147 = vlaneseq
        %v2148 = vshrl.u32 %v2147, 7
        %v2149 = vsub.s32 1, %v2148
        %v2150 = vrot.slane %v2141, %v2149
        %v2153 = vmul.f32 %v486, %v2146
        %v2154 = vmul.f32 %v487, %v2150
        %v2155 = vmul.f32 %v488, %v2146
        %v2156 = vmul.f32 %v489, %v2150
        %v2157 = vmul.f32 %v490, %v2146
        %v2158 = vmul.f32 %v491, %v2150
        %v2159 = vmul.f32 %v492, %v2146
        %v2160 = vmul.f32 %v493, %v2150
        %2161 = vst [vmem:[%s190] sm:$0xff] %v2153
        %2162 = vst [vmem:[%s190 + $0x8] sm:$0xff] %v2154
        %2163 = vst [vmem:[%s190 + $0x10] sm:$0xff] %v2155
        %2164 = vst [vmem:[%s190 + $0x18] sm:$0xff] %v2156
        %2165 = vst [vmem:[%s190 + $0x20] sm:$0xff] %v2157
        %2166 = vst [vmem:[%s190 + $0x28] sm:$0xff] %v2158
        %2167 = vst [vmem:[%s190 + $0x30] sm:$0xff] %v2159
        %2168 = vst [vmem:[%s190 + $0x38] sm:$0xff] %v2160
        %s2169 = sand.u32 %s115, 1
        %s2170 = scalar_lea.sflag [#allocation5], %s2169
        %s2171 = sand.u32 %s115, 1
        %s2172 = smul.addr %s2171, 64
        %s2173 = scalar_lea.vmem [#allocation4], %s2172
        // Predicated region
        $region37: #{tpu_custom_call.1} parent=35 // pred_check
          %p2174 = pneg %p125
        $region38: #{tpu_custom_call.1} parent=35 // pred_check_branch
          %2176 = sbr.rel (%p2174) target = $region40
        $region39: #{tpu_custom_call.1} parent=35 // pred_region
          %s2178 = ssub.s32 1024, 1024
          %2179 = vsyncadd %s2170, %s2178
          %s2180 = smul.addr %s18, 8
          %s2181 = smul.addr %s2180, 128
          %s2182 = scalar_lea.hbm %s4, %s2181
          %s2183 = sshll.u32 %s2173, 4
          %s2184 = int_to_ptr.vmem [resolvable:$true] %s2183
          %2189 = dma.vmem_to_hbm [thread:$0]  %s2184, 1024, %s2182, %s2170, 256, 256, 16
        $region40: #{tpu_custom_call.1} parent=35 // pred_fallthru
          _
      $region36: #{tpu_custom_call.1} parent=5 // pred_fallthru
        _
      %p2190 = scmp.le.s32.totalorder 2, %s13
      // Predicated region
      $region41: #{tpu_custom_call.1} parent=5 // pred_check
        %p2191 = pneg %p2190
      $region42: #{tpu_custom_call.1} parent=5 // pred_check_branch
        %2193 = sbr.rel (%p2191) target = $region44
      $region43: #{tpu_custom_call.1} parent=5 // pred_region
        %s2194 = ssub.s32 %s13, 2
        // Predicated region
        $region45: #{tpu_custom_call.1} parent=43 // pred_check
          %p2195 = pneg %p131
        $region46: #{tpu_custom_call.1} parent=43 // pred_check_branch
          %2197 = sbr.rel (%p2195) target = $region48
        $region47: #{tpu_custom_call.1} parent=43 // pred_region
          %s2198 = sand.u32 %s116, 1
          %s2199 = scalar_lea.sflag [#allocation5], %s2198
          %s2200 = sand.u32 %s116, 1
          %s2201 = smul.addr %s2200, 64
          %s2202 = scalar_lea.vmem [#allocation4], %s2201
          %2203 = dma.done %s2199, 1024
        $region48: #{tpu_custom_call.1} parent=43 // pred_fallthru
          _
      $region44: #{tpu_custom_call.1} parent=5 // pred_fallthru
        _
    $region6: #{tpu_custom_call.1} parent=1 // loop_footer
      %s17 = sadd.s32 1, %s13
    $region7: #{tpu_custom_call.1} parent=1 // loop_footer_branch
      %12 = sbr.rel target = $region3
    $region8: #{tpu_custom_call.1} parent=1 // loop_exit
      _
    %2204 = vsyncpa [#allocation5], 1
    %s2205 = scalar_lea.sflag [#allocation5], 1
    %2206 = vsyncpa %s2205, 1

</llo_original>
